<compile_context>
chip_gen: v5e
topology: v5e:2x2
jax: 0.10.0
libtpu: 0.0.40
codegen_flags: <defaults>
</compile_context>

<pallas_src>
import math
import functools

import jax
import jax.numpy as jnp
from jax import lax
from jax.experimental import pallas as pl
from jax.experimental.pallas import tpu as pltpu

_INV_SQRT2 = 1.0 / math.sqrt(2.0)
_LANE = 128


def _round_up(x, m):
    return ((x + m - 1) // m) * m


def _choose_tm(m, max_tm):
    """Largest row-tile that divides M, prefers multiples of 8, capped at max_tm."""
    if m <= max_tm:
        return m
    for tm in range(max_tm, 7, -1):
        if m % tm == 0 and tm % 8 == 0:
            return tm
    for tm in range(max_tm, 0, -1):
        if m % tm == 0:
            return tm
    return m


# ---------------------------------------------------------------------------
# Pass 1: patch-matmul + per-channel sum / sumsq accumulation (BN statistics).
# ---------------------------------------------------------------------------
def _conv_stats_kernel(x_ref, w_ref, sum_ref, sq_ref):
    @pl.when(pl.program_id(0) == 0)
    def _():
        sum_ref[...] = jnp.zeros_like(sum_ref)
        sq_ref[...] = jnp.zeros_like(sq_ref)

    y = jnp.dot(x_ref[...], w_ref[...], preferred_element_type=jnp.float32)
    sum_ref[...] += jnp.sum(y, axis=0, keepdims=True)
    sq_ref[...] += jnp.sum(y * y, axis=0, keepdims=True)


# ---------------------------------------------------------------------------
# Pass 2: recompute patch-matmul, apply folded BN scale/shift + exact-erf GELU.
# ---------------------------------------------------------------------------
def _conv_bn_gelu_apply_kernel(x_ref, w_ref, scale_ref, shift_ref, o_ref):
    y = jnp.dot(x_ref[...], w_ref[...], preferred_element_type=jnp.float32)
    y = y * scale_ref[...] + shift_ref[...]
    o_ref[...] = (0.5 * y * (1.0 + lax.erf(y * _INV_SQRT2))).astype(o_ref.dtype)


def _conv_bn_gelu_block_nhwc(x_nhwc, w_ko, gamma_row, beta_row, *,
                             max_tm, matmul_dtype):
    """One (Conv2d k=2 s=2 -> BN -> GELU) block.

    x_nhwc:    (N, H, W, C)    activations (C may already be lane-padded)
    w_ko:      (K=4*C, O_pad)  conv weight, (kh, kw, c)-flattened, zero-padded
    gamma_row: (1, O_pad)      BN gamma (zero in padded columns)
    beta_row:  (1, O_pad)      BN beta  (zero in padded columns)
    returns:   (N, H//2, W//2, O_pad)
    """
    N, H, W, C = x_nhwc.shape
    K, O = w_ko.shape
    assert K == 4 * C
    Ho, Wo = H // 2, W // 2
    M = N * Ho * Wo

    # Non-overlapping 2x2 patches from the NHWC view, flattened (kh, kw, c):
    # channels stay in the lane position, so this is cheap layout plumbing.
    patches = (
        x_nhwc.reshape(N, Ho, 2, Wo, 2, C)
        .transpose(0, 1, 3, 2, 4, 5)
        .reshape(M, K)
        .astype(matmul_dtype)
    )
    w_ko = w_ko.astype(matmul_dtype)

    tm = _choose_tm(M, max_tm)
    nt = M // tm

    itemsize = jnp.dtype(matmul_dtype).itemsize
    need = (2 * tm * K * itemsize      # double-buffered patch tiles
            + 2 * K * O * itemsize     # resident weight (conservative x2)
            + 2 * tm * O * itemsize    # double-buffered output tiles
            + 8 * O * 4)               # stats / scale / shift rows
    vmem_limit = int(min(max(2 * need, 16 * 1024 * 1024), 64 * 1024 * 1024))

    # ---- pass 1: per-channel sum / sumsq over all rows -------------------
    col_sum, col_sq = pl.pallas_call(
        _conv_stats_kernel,
        out_shape=(jax.ShapeDtypeStruct((1, O), jnp.float32),
                   jax.ShapeDtypeStruct((1, O), jnp.float32)),
        grid=(nt,),
        in_specs=[
            pl.BlockSpec((tm, K), lambda i: (i, 0)),
            pl.BlockSpec((K, O), lambda i: (0, 0)),
        ],
        out_specs=(
            pl.BlockSpec((1, O), lambda i: (0, 0)),
            pl.BlockSpec((1, O), lambda i: (0, 0)),
        ),
        compiler_params=pltpu.CompilerParams(
            dimension_semantics=("arbitrary",),
            vmem_limit_bytes=vmem_limit,
        ),
    )(patches, w_ko)

    # Fold BN into a single scale/shift per channel (tiny, plain JAX, f32).
    inv_m = 1.0 / float(M)
    mean = col_sum * inv_m
    var = jnp.maximum(col_sq * inv_m - mean * mean, 0.0)
    rstd = lax.rsqrt(var + 1e-5)
    scale = gamma_row.astype(jnp.float32) * rstd              # (1, O)
    shift = beta_row.astype(jnp.float32) - mean * scale       # (1, O)

    # ---- pass 2: normalize + affine + GELU (fully parallel over row tiles) --
    out = pl.pallas_call(
        _conv_bn_gelu_apply_kernel,
        out_shape=jax.ShapeDtypeStruct((M, O), matmul_dtype),
        grid=(nt,),
        in_specs=[
            pl.BlockSpec((tm, K), lambda i: (i, 0)),
            pl.BlockSpec((K, O), lambda i: (0, 0)),
            pl.BlockSpec((1, O), lambda i: (0, 0)),
            pl.BlockSpec((1, O), lambda i: (0, 0)),
        ],
        out_specs=pl.BlockSpec((tm, O), lambda i: (i, 0)),
        compiler_params=pltpu.CompilerParams(
            dimension_semantics=("parallel",),
            vmem_limit_bytes=vmem_limit,
        ),
    )(patches, w_ko, scale, shift)

    return out.reshape(N, Ho, Wo, O)


def init_downsample_stack(key, in_channels, out_channels, factor):
    """Deterministic params mimicking PyTorch default init shapes."""
    params = []
    cur = in_channels
    f = factor
    while f > 1:
        key, kw, kb = jax.random.split(key, 3)
        fan_in = cur * 2 * 2
        bound = 1.0 / math.sqrt(fan_in)
        w = jax.random.uniform(
            kw, (out_channels, cur, 2, 2), jnp.float32, -bound, bound
        )
        b = jax.random.uniform(kb, (out_channels,), jnp.float32, -bound, bound)
        gamma = jnp.ones((out_channels,), jnp.float32)
        beta = jnp.zeros((out_channels,), jnp.float32)
        params.append((w, b, gamma, beta))
        cur = out_channels
        f //= 2
    return params


@functools.partial(jax.jit, static_argnames=("max_tm", "matmul_dtype"))
def downsample_stack_forward(x_nchw, params, *, max_tm=512,
                             matmul_dtype=jnp.float32):
    """DownsampleStack forward. x_nchw: (N, Cin, H, W) -> (N, Cout, H/f, W/f)."""
    # NCHW -> NHWC once; stay NHWC-resident across the whole stack.
    x = jnp.transpose(x_nchw, (0, 2, 3, 1)).astype(matmul_dtype)

    out_channels = params[-1][0].shape[0]
    for (w, b, gamma, beta) in params:
        del b  # exactly cancelled by training-mode BN mean subtraction
        o, cin, _, _ = w.shape
        c_cur = x.shape[-1]                      # may carry lane padding
        o_pad = _round_up(o, _LANE)              # lane-dense output stores

        # (O, Cin, 2, 2) -> (O, kh, kw, Cin) -> pad Cin to c_cur -> (K, O_pad)
        w_r = jnp.transpose(w, (0, 2, 3, 1))
        if c_cur > cin:
            w_r = jnp.pad(w_r, ((0, 0), (0, 0), (0, 0), (0, c_cur - cin)))
        w_ko = w_r.reshape(o, 4 * c_cur).T
        if o_pad > o:
            w_ko = jnp.pad(w_ko, ((0, 0), (0, o_pad - o)))
        g_row = jnp.pad(gamma, (0, o_pad - o)).reshape(1, o_pad)
        b_row = jnp.pad(beta, (0, o_pad - o)).reshape(1, o_pad)

        x = _conv_bn_gelu_block_nhwc(
            x, w_ko, g_row, b_row, max_tm=max_tm, matmul_dtype=matmul_dtype
        )

    # Slice off channel padding, back to NCHW once at the end.
    x = x[..., :out_channels]
    return jnp.transpose(x, (0, 3, 1, 2)).astype(jnp.float32)


def _reference_forward(x, params):
    """Pure-JAX reference (matches PyTorch: conv+bias, training-mode BN, erf GELU)."""
    for (w, b, gamma, beta) in params:
        y = lax.conv_general_dilated(
            x.astype(jnp.float32),
            w.astype(jnp.float32),
            window_strides=(2, 2),
            padding="VALID",
            dimension_numbers=("NCHW", "OIHW", "NCHW"),
        ) + b.reshape(1, -1, 1, 1)
        mean = jnp.mean(y, axis=(0, 2, 3), keepdims=True)
        var = jnp.mean((y - mean) ** 2, axis=(0, 2, 3), keepdims=True)
        y = (y - mean) / jnp.sqrt(var + 1e-5)
        y = y * gamma.reshape(1, -1, 1, 1) + beta.reshape(1, -1, 1, 1)
        x = 0.5 * y * (1.0 + lax.erf(y / jnp.sqrt(2.0)))
    return x


if __name__ == "__main__":
    key = jax.random.PRNGKey(0)
    k_x, k_p = jax.random.split(key)

    batch, in_channels, spatial = 2, 4, 16
    out_channels, factor = 32, 4  # factor=4 -> two conv/bn/gelu blocks

    x = jax.random.normal(k_x, (batch, in_channels, spatial, spatial), jnp.float32)
    params = init_downsample_stack(k_p, in_channels, out_channels, factor)

    out = downsample_stack_forward(x, params)
    out = jax.block_until_ready(out)

    ref = _reference_forward(x, params)
    assert out.shape == (batch, out_channels, spatial // factor, spatial // factor)
    assert jnp.allclose(out, ref, atol=1e-4, rtol=1e-4), "mismatch vs reference"

    print("KERNEL_OK")
</pallas_src>

<mosaic_0001>
module attributes {stable_mosaic.version = 11 : i64} {
  func.func @_conv_stats_kernel(%arg0: i32, %arg1: memref<128x16xf32, #tpu.memory_space<vmem>>, %arg2: memref<16x128xf32, #tpu.memory_space<vmem>>, %arg3: memref<1x128xf32, #tpu.memory_space<vmem>>, %arg4: memref<1x128xf32, #tpu.memory_space<vmem>>) attributes {dimension_semantics = [#tpu.dimension_semantics<arbitrary>], iteration_bounds = array<i64: 1>, scalar_prefetch = 0 : i64, scratch_operands = 0 : i64, tpu.core_type = #tpu.core_type<tc>, window_params = [{transform_indices = @transform_0, window_bounds = array<i64: 128, 16>}, {pipeline_mode = #tpu.pipeline_mode<synchronous>, transform_indices = @transform_1, window_bounds = array<i64: 16, 128>}, {pipeline_mode = #tpu.pipeline_mode<synchronous>, transform_indices = @transform_2, window_bounds = array<i64: 1, 128>}, {pipeline_mode = #tpu.pipeline_mode<synchronous>, transform_indices = @transform_3, window_bounds = array<i64: 1, 128>}]} {
    %c0_i32 = arith.constant 0 : i32
    %0 = arith.cmpi eq, %arg0, %c0_i32 : i32
    %1 = arith.extui %0 : i1 to i32
    %c0_i32_0 = arith.constant 0 : i32
    %2 = arith.cmpi ne, %1, %c0_i32_0 : i32
    scf.if %2 {
      %cst_14 = arith.constant 0.000000e+00 : f32
      %17 = vector.broadcast %cst_14 : f32 to vector<1x128xf32>
      %c0_15 = arith.constant 0 : index
      %c0_16 = arith.constant 0 : index
      %18 = vector.load %arg3[%c0_15, %c0_16] : memref<1x128xf32, #tpu.memory_space<vmem>>, vector<1x128xf32>
      tpu.vector_store %arg3[%c0_15, %c0_16], %17 {strides = array<i32>} : memref<1x128xf32, #tpu.memory_space<vmem>>, vector<1x128xf32>,
      %cst_17 = arith.constant 0.000000e+00 : f32
      %19 = vector.broadcast %cst_17 : f32 to vector<1x128xf32>
      %c0_18 = arith.constant 0 : index
      %c0_19 = arith.constant 0 : index
      %20 = vector.load %arg4[%c0_18, %c0_19] : memref<1x128xf32, #tpu.memory_space<vmem>>, vector<1x128xf32>
      tpu.vector_store %arg4[%c0_18, %c0_19], %19 {strides = array<i32>} : memref<1x128xf32, #tpu.memory_space<vmem>>, vector<1x128xf32>,
    } else {
    }
    %c0 = arith.constant 0 : index
    %c0_1 = arith.constant 0 : index
    %3 = vector.load %arg1[%c0, %c0_1] : memref<128x16xf32, #tpu.memory_space<vmem>>, vector<128x16xf32>
    %c0_2 = arith.constant 0 : index
    %c0_3 = arith.constant 0 : index
    %4 = vector.load %arg2[%c0_2, %c0_3] : memref<16x128xf32, #tpu.memory_space<vmem>>, vector<16x128xf32>
    %cst = arith.constant dense<0.000000e+00> : vector<128x128xf32>
    %5 = tpu.matmul %3, %4, %cst {dimension_numbers = #tpu.dot_dimension_numbers<[1], [0], [0], [1], [0, 0, 1, 1], [], []>} : vector<128x16xf32>, vector<16x128xf32>, vector<128x128xf32> -> vector<128x128xf32>
    %c0_4 = arith.constant 0 : index
    %c0_5 = arith.constant 0 : index
    %6 = vector.load %arg3[%c0_4, %c0_5] : memref<1x128xf32, #tpu.memory_space<vmem>>, vector<1x128xf32>
    %cst_6 = arith.constant dense<0.000000e+00> : vector<128xf32>
    %7 = vector.multi_reduction <add>, %5, %cst_6 [0] : vector<128x128xf32> to vector<128xf32>
    %8 = vector.shape_cast %7 : vector<128xf32> to vector<1x128xf32>
    %9 = arith.addf %6, %8 : vector<1x128xf32>
    %c0_7 = arith.constant 0 : index
    %c0_8 = arith.constant 0 : index
    %10 = vector.load %arg3[%c0_7, %c0_8] : memref<1x128xf32, #tpu.memory_space<vmem>>, vector<1x128xf32>
    tpu.vector_store %arg3[%c0_7, %c0_8], %9 {strides = array<i32>} : memref<1x128xf32, #tpu.memory_space<vmem>>, vector<1x128xf32>,
    %c0_9 = arith.constant 0 : index
    %c0_10 = arith.constant 0 : index
    %11 = vector.load %arg4[%c0_9, %c0_10] : memref<1x128xf32, #tpu.memory_space<vmem>>, vector<1x128xf32>
    %12 = arith.mulf %5, %5 : vector<128x128xf32>
    %cst_11 = arith.constant dense<0.000000e+00> : vector<128xf32>
    %13 = vector.multi_reduction <add>, %12, %cst_11 [0] : vector<128x128xf32> to vector<128xf32>
    %14 = vector.shape_cast %13 : vector<128xf32> to vector<1x128xf32>
    %15 = arith.addf %11, %14 : vector<1x128xf32>
    %c0_12 = arith.constant 0 : index
    %c0_13 = arith.constant 0 : index
    %16 = vector.load %arg4[%c0_12, %c0_13] : memref<1x128xf32, #tpu.memory_space<vmem>>, vector<1x128xf32>
    tpu.vector_store %arg4[%c0_12, %c0_13], %15 {strides = array<i32>} : memref<1x128xf32, #tpu.memory_space<vmem>>, vector<1x128xf32>,
    return
  }
  func.func @transform_0(%arg0: i32) -> (i32, i32) {
    %c0_i32 = arith.constant 0 : i32
    %c0_i32_0 = arith.constant 0 : i32
    return %arg0, %c0_i32 : i32, i32
  }
  func.func @transform_1(%arg0: i32) -> (i32, i32) {
    %c0_i32 = arith.constant 0 : i32
    %c0_i32_0 = arith.constant 0 : i32
    %c0_i32_1 = arith.constant 0 : i32
    return %c0_i32, %c0_i32_0 : i32, i32
  }
  func.func @transform_2(%arg0: i32) -> (i32, i32) {
    %c0_i32 = arith.constant 0 : i32
    %c0_i32_0 = arith.constant 0 : i32
    %c0_i32_1 = arith.constant 0 : i32
    return %c0_i32, %c0_i32_0 : i32, i32
  }
  func.func @transform_3(%arg0: i32) -> (i32, i32) {
    %c0_i32 = arith.constant 0 : i32
    %c0_i32_0 = arith.constant 0 : i32
    %c0_i32_1 = arith.constant 0 : i32
    return %c0_i32, %c0_i32_0 : i32, i32
  }
}

module attributes {stable_mosaic.version = 11 : i64} {
  func.func @_conv_bn_gelu_apply_kernel(%arg0: i32, %arg1: memref<128x16xf32, #tpu.memory_space<vmem>>, %arg2: memref<16x128xf32, #tpu.memory_space<vmem>>, %arg3: memref<1x128xf32, #tpu.memory_space<vmem>>, %arg4: memref<1x128xf32, #tpu.memory_space<vmem>>, %arg5: memref<128x128xf32, #tpu.memory_space<vmem>>) attributes {dimension_semantics = [#tpu.dimension_semantics<parallel>], iteration_bounds = array<i64: 1>, scalar_prefetch = 0 : i64, scratch_operands = 0 : i64, tpu.core_type = #tpu.core_type<tc>, window_params = [{transform_indices = @transform_0, window_bounds = array<i64: 128, 16>}, {pipeline_mode = #tpu.pipeline_mode<synchronous>, transform_indices = @transform_1, window_bounds = array<i64: 16, 128>}, {pipeline_mode = #tpu.pipeline_mode<synchronous>, transform_indices = @transform_2, window_bounds = array<i64: 1, 128>}, {pipeline_mode = #tpu.pipeline_mode<synchronous>, transform_indices = @transform_3, window_bounds = array<i64: 1, 128>}, {transform_indices = @transform_4, window_bounds = array<i64: 128, 128>}]} {
    %c0 = arith.constant 0 : index
    %c0_0 = arith.constant 0 : index
    %0 = vector.load %arg1[%c0, %c0_0] : memref<128x16xf32, #tpu.memory_space<vmem>>, vector<128x16xf32>
    %c0_1 = arith.constant 0 : index
    %c0_2 = arith.constant 0 : index
    %1 = vector.load %arg2[%c0_1, %c0_2] : memref<16x128xf32, #tpu.memory_space<vmem>>, vector<16x128xf32>
    %cst = arith.constant dense<0.000000e+00> : vector<128x128xf32>
    %2 = tpu.matmul %0, %1, %cst {dimension_numbers = #tpu.dot_dimension_numbers<[1], [0], [0], [1], [0, 0, 1, 1], [], []>} : vector<128x16xf32>, vector<16x128xf32>, vector<128x128xf32> -> vector<128x128xf32>
    %c0_3 = arith.constant 0 : index
    %c0_4 = arith.constant 0 : index
    %3 = vector.load %arg3[%c0_3, %c0_4] : memref<1x128xf32, #tpu.memory_space<vmem>>, vector<1x128xf32>
    %4 = vector.broadcast %3 : vector<1x128xf32> to vector<128x128xf32>
    %5 = arith.mulf %2, %4 : vector<128x128xf32>
    %c0_5 = arith.constant 0 : index
    %c0_6 = arith.constant 0 : index
    %6 = vector.load %arg4[%c0_5, %c0_6] : memref<1x128xf32, #tpu.memory_space<vmem>>, vector<1x128xf32>
    %7 = vector.broadcast %6 : vector<1x128xf32> to vector<128x128xf32>
    %8 = arith.addf %5, %7 : vector<128x128xf32>
    %cst_7 = arith.constant 5.000000e-01 : f32
    %9 = vector.broadcast %cst_7 : f32 to vector<128x128xf32>
    %10 = arith.mulf %9, %8 : vector<128x128xf32>
    %cst_8 = arith.constant 0.707106769 : f32
    %11 = vector.broadcast %cst_8 : f32 to vector<128x128xf32>
    %12 = arith.mulf %8, %11 : vector<128x128xf32>
    %13 = math.erf %12 : vector<128x128xf32>
    %cst_9 = arith.constant 1.000000e+00 : f32
    %14 = vector.broadcast %cst_9 : f32 to vector<128x128xf32>
    %15 = arith.addf %14, %13 : vector<128x128xf32>
    %16 = arith.mulf %10, %15 : vector<128x128xf32>
    %c0_10 = arith.constant 0 : index
    %c0_11 = arith.constant 0 : index
    %17 = vector.load %arg5[%c0_10, %c0_11] : memref<128x128xf32, #tpu.memory_space<vmem>>, vector<128x128xf32>
    tpu.vector_store %arg5[%c0_10, %c0_11], %16 {strides = array<i32>} : memref<128x128xf32, #tpu.memory_space<vmem>>, vector<128x128xf32>,
    return
  }
  func.func @transform_0(%arg0: i32) -> (i32, i32) {
    %c0_i32 = arith.constant 0 : i32
    %c0_i32_0 = arith.constant 0 : i32
    return %arg0, %c0_i32 : i32, i32
  }
  func.func @transform_1(%arg0: i32) -> (i32, i32) {
    %c0_i32 = arith.constant 0 : i32
    %c0_i32_0 = arith.constant 0 : i32
    %c0_i32_1 = arith.constant 0 : i32
    return %c0_i32, %c0_i32_0 : i32, i32
  }
  func.func @transform_2(%arg0: i32) -> (i32, i32) {
    %c0_i32 = arith.constant 0 : i32
    %c0_i32_0 = arith.constant 0 : i32
    %c0_i32_1 = arith.constant 0 : i32
    return %c0_i32, %c0_i32_0 : i32, i32
  }
  func.func @transform_3(%arg0: i32) -> (i32, i32) {
    %c0_i32 = arith.constant 0 : i32
    %c0_i32_0 = arith.constant 0 : i32
    %c0_i32_1 = arith.constant 0 : i32
    return %c0_i32, %c0_i32_0 : i32, i32
  }
  func.func @transform_4(%arg0: i32) -> (i32, i32) {
    %c0_i32 = arith.constant 0 : i32
    %c0_i32_0 = arith.constant 0 : i32
    return %arg0, %c0_i32 : i32, i32
  }
}

module attributes {stable_mosaic.version = 11 : i64} {
  func.func @_conv_stats_kernel(%arg0: i32, %arg1: memref<32x512xf32, #tpu.memory_space<vmem>>, %arg2: memref<512x128xf32, #tpu.memory_space<vmem>>, %arg3: memref<1x128xf32, #tpu.memory_space<vmem>>, %arg4: memref<1x128xf32, #tpu.memory_space<vmem>>) attributes {dimension_semantics = [#tpu.dimension_semantics<arbitrary>], iteration_bounds = array<i64: 1>, scalar_prefetch = 0 : i64, scratch_operands = 0 : i64, tpu.core_type = #tpu.core_type<tc>, window_params = [{transform_indices = @transform_0, window_bounds = array<i64: 32, 512>}, {pipeline_mode = #tpu.pipeline_mode<synchronous>, transform_indices = @transform_1, window_bounds = array<i64: 512, 128>}, {pipeline_mode = #tpu.pipeline_mode<synchronous>, transform_indices = @transform_2, window_bounds = array<i64: 1, 128>}, {pipeline_mode = #tpu.pipeline_mode<synchronous>, transform_indices = @transform_3, window_bounds = array<i64: 1, 128>}]} {
    %c0_i32 = arith.constant 0 : i32
    %0 = arith.cmpi eq, %arg0, %c0_i32 : i32
    %1 = arith.extui %0 : i1 to i32
    %c0_i32_0 = arith.constant 0 : i32
    %2 = arith.cmpi ne, %1, %c0_i32_0 : i32
    scf.if %2 {
      %cst_14 = arith.constant 0.000000e+00 : f32
      %17 = vector.broadcast %cst_14 : f32 to vector<1x128xf32>
      %c0_15 = arith.constant 0 : index
      %c0_16 = arith.constant 0 : index
      %18 = vector.load %arg3[%c0_15, %c0_16] : memref<1x128xf32, #tpu.memory_space<vmem>>, vector<1x128xf32>
      tpu.vector_store %arg3[%c0_15, %c0_16], %17 {strides = array<i32>} : memref<1x128xf32, #tpu.memory_space<vmem>>, vector<1x128xf32>,
      %cst_17 = arith.constant 0.000000e+00 : f32
      %19 = vector.broadcast %cst_17 : f32 to vector<1x128xf32>
      %c0_18 = arith.constant 0 : index
      %c0_19 = arith.constant 0 : index
      %20 = vector.load %arg4[%c0_18, %c0_19] : memref<1x128xf32, #tpu.memory_space<vmem>>, vector<1x128xf32>
      tpu.vector_store %arg4[%c0_18, %c0_19], %19 {strides = array<i32>} : memref<1x128xf32, #tpu.memory_space<vmem>>, vector<1x128xf32>,
    } else {
    }
    %c0 = arith.constant 0 : index
    %c0_1 = arith.constant 0 : index
    %3 = vector.load %arg1[%c0, %c0_1] : memref<32x512xf32, #tpu.memory_space<vmem>>, vector<32x512xf32>
    %c0_2 = arith.constant 0 : index
    %c0_3 = arith.constant 0 : index
    %4 = vector.load %arg2[%c0_2, %c0_3] : memref<512x128xf32, #tpu.memory_space<vmem>>, vector<512x128xf32>
    %cst = arith.constant dense<0.000000e+00> : vector<32x128xf32>
    %5 = tpu.matmul %3, %4, %cst {dimension_numbers = #tpu.dot_dimension_numbers<[1], [0], [0], [1], [0, 0, 1, 1], [], []>} : vector<32x512xf32>, vector<512x128xf32>, vector<32x128xf32> -> vector<32x128xf32>
    %c0_4 = arith.constant 0 : index
    %c0_5 = arith.constant 0 : index
    %6 = vector.load %arg3[%c0_4, %c0_5] : memref<1x128xf32, #tpu.memory_space<vmem>>, vector<1x128xf32>
    %cst_6 = arith.constant dense<0.000000e+00> : vector<128xf32>
    %7 = vector.multi_reduction <add>, %5, %cst_6 [0] : vector<32x128xf32> to vector<128xf32>
    %8 = vector.shape_cast %7 : vector<128xf32> to vector<1x128xf32>
    %9 = arith.addf %6, %8 : vector<1x128xf32>
    %c0_7 = arith.constant 0 : index
    %c0_8 = arith.constant 0 : index
    %10 = vector.load %arg3[%c0_7, %c0_8] : memref<1x128xf32, #tpu.memory_space<vmem>>, vector<1x128xf32>
    tpu.vector_store %arg3[%c0_7, %c0_8], %9 {strides = array<i32>} : memref<1x128xf32, #tpu.memory_space<vmem>>, vector<1x128xf32>,
    %c0_9 = arith.constant 0 : index
    %c0_10 = arith.constant 0 : index
    %11 = vector.load %arg4[%c0_9, %c0_10] : memref<1x128xf32, #tpu.memory_space<vmem>>, vector<1x128xf32>
    %12 = arith.mulf %5, %5 : vector<32x128xf32>
    %cst_11 = arith.constant dense<0.000000e+00> : vector<128xf32>
    %13 = vector.multi_reduction <add>, %12, %cst_11 [0] : vector<32x128xf32> to vector<128xf32>
    %14 = vector.shape_cast %13 : vector<128xf32> to vector<1x128xf32>
    %15 = arith.addf %11, %14 : vector<1x128xf32>
    %c0_12 = arith.constant 0 : index
    %c0_13 = arith.constant 0 : index
    %16 = vector.load %arg4[%c0_12, %c0_13] : memref<1x128xf32, #tpu.memory_space<vmem>>, vector<1x128xf32>
    tpu.vector_store %arg4[%c0_12, %c0_13], %15 {strides = array<i32>} : memref<1x128xf32, #tpu.memory_space<vmem>>, vector<1x128xf32>,
    return
  }
  func.func @transform_0(%arg0: i32) -> (i32, i32) {
    %c0_i32 = arith.constant 0 : i32
    %c0_i32_0 = arith.constant 0 : i32
    return %arg0, %c0_i32 : i32, i32
  }
  func.func @transform_1(%arg0: i32) -> (i32, i32) {
    %c0_i32 = arith.constant 0 : i32
    %c0_i32_0 = arith.constant 0 : i32
    %c0_i32_1 = arith.constant 0 : i32
    return %c0_i32, %c0_i32_0 : i32, i32
  }
  func.func @transform_2(%arg0: i32) -> (i32, i32) {
    %c0_i32 = arith.constant 0 : i32
    %c0_i32_0 = arith.constant 0 : i32
    %c0_i32_1 = arith.constant 0 : i32
    return %c0_i32, %c0_i32_0 : i32, i32
  }
  func.func @transform_3(%arg0: i32) -> (i32, i32) {
    %c0_i32 = arith.constant 0 : i32
    %c0_i32_0 = arith.constant 0 : i32
    %c0_i32_1 = arith.constant 0 : i32
    return %c0_i32, %c0_i32_0 : i32, i32
  }
}

module attributes {stable_mosaic.version = 11 : i64} {
  func.func @_conv_bn_gelu_apply_kernel(%arg0: i32, %arg1: memref<32x512xf32, #tpu.memory_space<vmem>>, %arg2: memref<512x128xf32, #tpu.memory_space<vmem>>, %arg3: memref<1x128xf32, #tpu.memory_space<vmem>>, %arg4: memref<1x128xf32, #tpu.memory_space<vmem>>, %arg5: memref<32x128xf32, #tpu.memory_space<vmem>>) attributes {dimension_semantics = [#tpu.dimension_semantics<parallel>], iteration_bounds = array<i64: 1>, scalar_prefetch = 0 : i64, scratch_operands = 0 : i64, tpu.core_type = #tpu.core_type<tc>, window_params = [{transform_indices = @transform_0, window_bounds = array<i64: 32, 512>}, {pipeline_mode = #tpu.pipeline_mode<synchronous>, transform_indices = @transform_1, window_bounds = array<i64: 512, 128>}, {pipeline_mode = #tpu.pipeline_mode<synchronous>, transform_indices = @transform_2, window_bounds = array<i64: 1, 128>}, {pipeline_mode = #tpu.pipeline_mode<synchronous>, transform_indices = @transform_3, window_bounds = array<i64: 1, 128>}, {transform_indices = @transform_4, window_bounds = array<i64: 32, 128>}]} {
    %c0 = arith.constant 0 : index
    %c0_0 = arith.constant 0 : index
    %0 = vector.load %arg1[%c0, %c0_0] : memref<32x512xf32, #tpu.memory_space<vmem>>, vector<32x512xf32>
    %c0_1 = arith.constant 0 : index
    %c0_2 = arith.constant 0 : index
    %1 = vector.load %arg2[%c0_1, %c0_2] : memref<512x128xf32, #tpu.memory_space<vmem>>, vector<512x128xf32>
    %cst = arith.constant dense<0.000000e+00> : vector<32x128xf32>
    %2 = tpu.matmul %0, %1, %cst {dimension_numbers = #tpu.dot_dimension_numbers<[1], [0], [0], [1], [0, 0, 1, 1], [], []>} : vector<32x512xf32>, vector<512x128xf32>, vector<32x128xf32> -> vector<32x128xf32>
    %c0_3 = arith.constant 0 : index
    %c0_4 = arith.constant 0 : index
    %3 = vector.load %arg3[%c0_3, %c0_4] : memref<1x128xf32, #tpu.memory_space<vmem>>, vector<1x128xf32>
    %4 = vector.broadcast %3 : vector<1x128xf32> to vector<32x128xf32>
    %5 = arith.mulf %2, %4 : vector<32x128xf32>
    %c0_5 = arith.constant 0 : index
    %c0_6 = arith.constant 0 : index
    %6 = vector.load %arg4[%c0_5, %c0_6] : memref<1x128xf32, #tpu.memory_space<vmem>>, vector<1x128xf32>
    %7 = vector.broadcast %6 : vector<1x128xf32> to vector<32x128xf32>
    %8 = arith.addf %5, %7 : vector<32x128xf32>
    %cst_7 = arith.constant 5.000000e-01 : f32
    %9 = vector.broadcast %cst_7 : f32 to vector<32x128xf32>
    %10 = arith.mulf %9, %8 : vector<32x128xf32>
    %cst_8 = arith.constant 0.707106769 : f32
    %11 = vector.broadcast %cst_8 : f32 to vector<32x128xf32>
    %12 = arith.mulf %8, %11 : vector<32x128xf32>
    %13 = math.erf %12 : vector<32x128xf32>
    %cst_9 = arith.constant 1.000000e+00 : f32
    %14 = vector.broadcast %cst_9 : f32 to vector<32x128xf32>
    %15 = arith.addf %14, %13 : vector<32x128xf32>
    %16 = arith.mulf %10, %15 : vector<32x128xf32>
    %c0_10 = arith.constant 0 : index
    %c0_11 = arith.constant 0 : index
    %17 = vector.load %arg5[%c0_10, %c0_11] : memref<32x128xf32, #tpu.memory_space<vmem>>, vector<32x128xf32>
    tpu.vector_store %arg5[%c0_10, %c0_11], %16 {strides = array<i32>} : memref<32x128xf32, #tpu.memory_space<vmem>>, vector<32x128xf32>,
    return
  }
  func.func @transform_0(%arg0: i32) -> (i32, i32) {
    %c0_i32 = arith.constant 0 : i32
    %c0_i32_0 = arith.constant 0 : i32
    return %arg0, %c0_i32 : i32, i32
  }
  func.func @transform_1(%arg0: i32) -> (i32, i32) {
    %c0_i32 = arith.constant 0 : i32
    %c0_i32_0 = arith.constant 0 : i32
    %c0_i32_1 = arith.constant 0 : i32
    return %c0_i32, %c0_i32_0 : i32, i32
  }
  func.func @transform_2(%arg0: i32) -> (i32, i32) {
    %c0_i32 = arith.constant 0 : i32
    %c0_i32_0 = arith.constant 0 : i32
    %c0_i32_1 = arith.constant 0 : i32
    return %c0_i32, %c0_i32_0 : i32, i32
  }
  func.func @transform_3(%arg0: i32) -> (i32, i32) {
    %c0_i32 = arith.constant 0 : i32
    %c0_i32_0 = arith.constant 0 : i32
    %c0_i32_1 = arith.constant 0 : i32
    return %c0_i32, %c0_i32_0 : i32, i32
  }
  func.func @transform_4(%arg0: i32) -> (i32, i32) {
    %c0_i32 = arith.constant 0 : i32
    %c0_i32_0 = arith.constant 0 : i32
    return %arg0, %c0_i32 : i32, i32
  }
}

</mosaic_0001>

<llo_original>
// kernel: downsample_stack_forward.4
$region0: #{downsample_stack_forward.4}
  #allocation0 [shape = 'u32[]', space=smem, size = 0x4, offset = 0x4, fixed_abs, tag = 'smem constant byte address 0x4 - core index']
  #allocation1 [shape = 'u32[72,128]{1,0:T(1,128)}', space=vmem, size = 0x9000, scoped, tag = 'internal scratch']
  %s0 = inlined_call_operand.vmem [shape: f32[128,16], index: 0, kind: input, shape index: {}]
  %s1 = inlined_call_operand.vmem [shape: f32[16,128], index: 1, kind: input, shape index: {}]
  %s2 = inlined_call_operand.vmem [shape: f32[1,128], index: 2, kind: output, shape index: {0}]
  %s3 = inlined_call_operand.vmem [shape: f32[1,128], index: 3, kind: output, shape index: {1}]
  %4 = xla_tuple %s2, %s3
  %s5 = sld [smem:[#allocation0]]
  $region30: #{downsample_stack_forward.4} parent=0
    _
  %s7 = ssub.s32 1, %s5
  %s8 = scalar_select 0, %s7, %s5
  // Predicated region
  $region2: #{downsample_stack_forward.4} parent=0 // pred_check
    _
  $region3: #{downsample_stack_forward.4} parent=0 // pred_check_branch
    %10 = sbr.rel (0) target = $region5
  $region4: #{downsample_stack_forward.4} parent=0 // pred_region
    _
  $region5: #{downsample_stack_forward.4} parent=0 // pred_fallthru
    _
  // Predicated region
  $region6: #{downsample_stack_forward.4} parent=0 // pred_check
    _
  $region7: #{downsample_stack_forward.4} parent=0 // pred_check_branch
    %12 = sbr.rel (0) target = $region9
  $region8: #{downsample_stack_forward.4} parent=0 // pred_region
    _
  $region9: #{downsample_stack_forward.4} parent=0 // pred_fallthru
    _
  %p13 = scmp.eq.s32.totalorder 0, 0
  // Predicated region
  $region10: #{downsample_stack_forward.4} parent=0 // pred_check
    %p14 = pneg %p13
  $region11: #{downsample_stack_forward.4} parent=0 // pred_check_branch
    %16 = sbr.rel (%p14) target = $region13
  $region12: #{downsample_stack_forward.4} parent=0 // pred_region
    %17 = vst [vmem:[%s2] sm:$0x1] 0.0
    %18 = vst [vmem:[%s3] sm:$0x1] 0.0
  $region13: #{downsample_stack_forward.4} parent=0 // pred_fallthru
    _
  %v19 = vld [vmem:[%s0] sm:$0xff]
  %v20 = vld [vmem:[%s0 + $0x8] sm:$0xff]
  %v21 = vld [vmem:[%s0 + $0x10] sm:$0xff]
  %v22 = vld [vmem:[%s0 + $0x18] sm:$0xff]
  %v23 = vld [vmem:[%s0 + $0x20] sm:$0xff]
  %v24 = vld [vmem:[%s0 + $0x28] sm:$0xff]
  %v25 = vld [vmem:[%s0 + $0x30] sm:$0xff]
  %v26 = vld [vmem:[%s0 + $0x38] sm:$0xff]
  %v27 = vld [vmem:[%s0 + $0x40] sm:$0xff]
  %v28 = vld [vmem:[%s0 + $0x48] sm:$0xff]
  %v29 = vld [vmem:[%s0 + $0x50] sm:$0xff]
  %v30 = vld [vmem:[%s0 + $0x58] sm:$0xff]
  %v31 = vld [vmem:[%s0 + $0x60] sm:$0xff]
  %v32 = vld [vmem:[%s0 + $0x68] sm:$0xff]
  %v33 = vld [vmem:[%s0 + $0x70] sm:$0xff]
  %v34 = vld [vmem:[%s0 + $0x78] sm:$0xff]
  %v35 = vld [vmem:[%s1] sm:$0xff]
  %v36 = vld [vmem:[%s1 + $0x8] sm:$0xff]
  %vm37 = vcmask 130048
  %v39 = vsel %vm37, %v19, 0
  %v42 = vsel %vm37, %v20, 0
  %v45 = vsel %vm37, %v21, 0
  %v48 = vsel %vm37, %v22, 0
  %v51 = vsel %vm37, %v23, 0
  %v54 = vsel %vm37, %v24, 0
  %v57 = vsel %vm37, %v25, 0
  %v60 = vsel %vm37, %v26, 0
  %v63 = vsel %vm37, %v27, 0
  %v66 = vsel %vm37, %v28, 0
  %v69 = vsel %vm37, %v29, 0
  %v72 = vsel %vm37, %v30, 0
  %v75 = vsel %vm37, %v31, 0
  %v78 = vsel %vm37, %v32, 0
  %v81 = vsel %vm37, %v33, 0
  %v84 = vsel %vm37, %v34, 0
  %86 = vmatpush.msra.mxu0 0.0
  %87 = vmatpush.msra.mxu0 0.0
  %88 = vmatpush.msra.mxu0 0.0
  %89 = vmatpush.msra.mxu0 0.0
  %90 = vmatpush.msra.mxu0 0.0
  %91 = vmatpush.msra.mxu0 0.0
  %92 = vmatpush.msra.mxu0 0.0
  %93 = vmatpush.msra.mxu0 0.0
  %94 = vmatpush.msra.mxu0 0.0
  %95 = vmatpush.msra.mxu0 0.0
  %96 = vmatpush.msra.mxu0 0.0
  %97 = vmatpush.msra.mxu0 0.0
  %98 = vmatpush.msra.mxu0 0.0
  %99 = vmatpush.msra.mxu0 0.0
  %100 = vmatpush.msra.mxu0 %v36
  %101 = vmatpush.msra.mxu0 %v35
  %102 = vmatmul.f32.gmra.mxu0 %v39
  %v103 = vpop.f32.mrf.mxu0
  %v104 = vadd.f32 0.0, %v103
  %105 = vmatmul.f32.gmra.mxu0 %v42
  %v106 = vpop.f32.mrf.mxu0
  %v107 = vadd.f32 0.0, %v106
  %108 = vmatmul.f32.gmra.mxu0 %v45
  %v109 = vpop.f32.mrf.mxu0
  %v110 = vadd.f32 0.0, %v109
  %111 = vmatmul.f32.gmra.mxu0 %v48
  %v112 = vpop.f32.mrf.mxu0
  %v113 = vadd.f32 0.0, %v112
  %114 = vmatmul.f32.gmra.mxu0 %v51
  %v115 = vpop.f32.mrf.mxu0
  %v116 = vadd.f32 0.0, %v115
  %117 = vmatmul.f32.gmra.mxu0 %v54
  %v118 = vpop.f32.mrf.mxu0
  %v119 = vadd.f32 0.0, %v118
  %120 = vmatmul.f32.gmra.mxu0 %v57
  %v121 = vpop.f32.mrf.mxu0
  %v122 = vadd.f32 0.0, %v121
  %123 = vmatmul.f32.gmra.mxu0 %v60
  %v124 = vpop.f32.mrf.mxu0
  %v125 = vadd.f32 0.0, %v124
  %126 = vmatmul.f32.gmra.mxu0 %v63
  %v127 = vpop.f32.mrf.mxu0
  %v128 = vadd.f32 0.0, %v127
  %129 = vmatmul.f32.gmra.mxu0 %v66
  %v130 = vpop.f32.mrf.mxu0
  %v131 = vadd.f32 0.0, %v130
  %132 = vmatmul.f32.gmra.mxu0 %v69
  %v133 = vpop.f32.mrf.mxu0
  %v134 = vadd.f32 0.0, %v133
  %135 = vmatmul.f32.gmra.mxu0 %v72
  %v136 = vpop.f32.mrf.mxu0
  %v137 = vadd.f32 0.0, %v136
  %138 = vmatmul.f32.gmra.mxu0 %v75
  %v139 = vpop.f32.mrf.mxu0
  %v140 = vadd.f32 0.0, %v139
  %141 = vmatmul.f32.gmra.mxu0 %v78
  %v142 = vpop.f32.mrf.mxu0
  %v143 = vadd.f32 0.0, %v142
  %144 = vmatmul.f32.gmra.mxu0 %v81
  %v145 = vpop.f32.mrf.mxu0
  %v146 = vadd.f32 0.0, %v145
  %147 = vmatmul.f32.gmra.mxu0 %v84
  %v148 = vpop.f32.mrf.mxu0
  %v149 = vadd.f32 0.0, %v148
  %150 = vdwg.mxu0
  %v151 = vld [vmem:[%s2] sm:$0x1]
  %v152 = vadd.f32 %v104, %v107
  %v153 = vadd.f32 %v152, %v110
  %v154 = vadd.f32 %v153, %v113
  %v155 = vadd.f32 %v154, %v116
  %v156 = vadd.f32 %v155, %v119
  %v157 = vadd.f32 %v156, %v122
  %v158 = vadd.f32 %v157, %v125
  %v159 = vadd.f32 %v158, %v128
  %v160 = vadd.f32 %v159, %v131
  %v161 = vadd.f32 %v160, %v134
  %v162 = vadd.f32 %v161, %v137
  %v163 = vadd.f32 %v162, %v140
  %v164 = vadd.f32 %v163, %v143
  %v165 = vadd.f32 %v164, %v146
  %v166 = vadd.f32 %v165, %v149
  %v167 = vrot.slane %v166, 4
  %v168 = vadd.f32 %v166, %v167
  %v169 = vrot.slane %v168, 2
  %v170 = vadd.f32 %v168, %v169
  %v171 = vrot.slane %v170, 1
  %v172 = vadd.f32 %v170, %v171
  %v173 = vadd.f32 %v151, %v172
  %174 = vst [vmem:[%s2] sm:$0x1] %v173
  %v175 = vld [vmem:[%s3] sm:$0x1]
  %v176 = vmul.f32 %v104, %v104
  %v177 = vmul.f32 %v107, %v107
  %v178 = vmul.f32 %v110, %v110
  %v179 = vmul.f32 %v113, %v113
  %v180 = vmul.f32 %v116, %v116
  %v181 = vmul.f32 %v119, %v119
  %v182 = vmul.f32 %v122, %v122
  %v183 = vmul.f32 %v125, %v125
  %v184 = vmul.f32 %v128, %v128
  %v185 = vmul.f32 %v131, %v131
  %v186 = vmul.f32 %v134, %v134
  %v187 = vmul.f32 %v137, %v137
  %v188 = vmul.f32 %v140, %v140
  %v189 = vmul.f32 %v143, %v143
  %v190 = vmul.f32 %v146, %v146
  %v191 = vmul.f32 %v149, %v149
  %v192 = vadd.f32 %v176, %v177
  %v193 = vadd.f32 %v192, %v178
  %v194 = vadd.f32 %v193, %v179
  %v195 = vadd.f32 %v194, %v180
  %v196 = vadd.f32 %v195, %v181
  %v197 = vadd.f32 %v196, %v182
  %v198 = vadd.f32 %v197, %v183
  %v199 = vadd.f32 %v198, %v184
  %v200 = vadd.f32 %v199, %v185
  %v201 = vadd.f32 %v200, %v186
  %v202 = vadd.f32 %v201, %v187
  %v203 = vadd.f32 %v202, %v188
  %v204 = vadd.f32 %v203, %v189
  %v205 = vadd.f32 %v204, %v190
  %v206 = vadd.f32 %v205, %v191
  %v207 = vrot.slane %v206, 4
  %v208 = vadd.f32 %v206, %v207
  %v209 = vrot.slane %v208, 2
  %v210 = vadd.f32 %v208, %v209
  %v211 = vrot.slane %v210, 1
  %v212 = vadd.f32 %v210, %v211
  %v213 = vadd.f32 %v175, %v212
  %214 = vst [vmem:[%s3] sm:$0x1] %v213
  // Predicated region
  $region14: #{downsample_stack_forward.4} parent=0 // pred_check
    _
  $region15: #{downsample_stack_forward.4} parent=0 // pred_check_branch
    %216 = sbr.rel (0) target = $region17
  $region16: #{downsample_stack_forward.4} parent=0 // pred_region
    _
  $region17: #{downsample_stack_forward.4} parent=0 // pred_fallthru
    _
  // Predicated region
  $region18: #{downsample_stack_forward.4} parent=0 // pred_check
    _
  $region19: #{downsample_stack_forward.4} parent=0 // pred_check_branch
    %218 = sbr.rel (0) target = $region21
  $region20: #{downsample_stack_forward.4} parent=0 // pred_region
    _
  $region21: #{downsample_stack_forward.4} parent=0 // pred_fallthru
    _
  // Predicated region
  $region22: #{downsample_stack_forward.4} parent=0 // pred_check
    _
  $region23: #{downsample_stack_forward.4} parent=0 // pred_check_branch
    %220 = sbr.rel (0) target = $region25
  $region24: #{downsample_stack_forward.4} parent=0 // pred_region
    _
  $region25: #{downsample_stack_forward.4} parent=0 // pred_fallthru
    _
  // Predicated region
  $region26: #{downsample_stack_forward.4} parent=0 // pred_check
    _
  $region27: #{downsample_stack_forward.4} parent=0 // pred_check_branch
    %222 = sbr.rel (0) target = $region29
  $region28: #{downsample_stack_forward.4} parent=0 // pred_region
    _
  $region29: #{downsample_stack_forward.4} parent=0 // pred_fallthru
    _

// kernel: downsample_stack_forward.5
$region0: #{downsample_stack_forward.5}
  #allocation0 [shape = 'u32[]', space=smem, size = 0x4, offset = 0x4, fixed_abs, tag = 'smem constant byte address 0x4 - core index']
  #allocation1 [shape = 'u32[72,128]{1,0:T(1,128)}', space=vmem, size = 0x9000, scoped, tag = 'internal scratch']
  %s0 = inlined_call_operand.vmem [shape: f32[128,16], index: 0, kind: input, shape index: {}]
  %s1 = inlined_call_operand.vmem [shape: f32[16,128], index: 1, kind: input, shape index: {}]
  %s2 = inlined_call_operand.vmem [shape: f32[1,128], index: 2, kind: input, shape index: {}]
  %s3 = inlined_call_operand.vmem [shape: f32[1,128], index: 3, kind: input, shape index: {}]
  %s4 = inlined_call_operand.vmem [shape: f32[128,128], index: 4, kind: output, shape index: {}]
  %s5 = sld [smem:[#allocation0]]
  $region26: #{downsample_stack_forward.5} parent=0
    _
  %s7 = ssub.s32 1, %s5
  %s8 = scalar_select 0, %s7, %s5
  // Predicated region
  $region2: #{downsample_stack_forward.5} parent=0 // pred_check
    _
  $region3: #{downsample_stack_forward.5} parent=0 // pred_check_branch
    %10 = sbr.rel (0) target = $region5
  $region4: #{downsample_stack_forward.5} parent=0 // pred_region
    _
  $region5: #{downsample_stack_forward.5} parent=0 // pred_fallthru
    _
  // Predicated region
  $region6: #{downsample_stack_forward.5} parent=0 // pred_check
    _
  $region7: #{downsample_stack_forward.5} parent=0 // pred_check_branch
    %12 = sbr.rel (0) target = $region9
  $region8: #{downsample_stack_forward.5} parent=0 // pred_region
    _
  $region9: #{downsample_stack_forward.5} parent=0 // pred_fallthru
    _
  // Predicated region
  $region10: #{downsample_stack_forward.5} parent=0 // pred_check
    _
  $region11: #{downsample_stack_forward.5} parent=0 // pred_check_branch
    %14 = sbr.rel (0) target = $region13
  $region12: #{downsample_stack_forward.5} parent=0 // pred_region
    _
  $region13: #{downsample_stack_forward.5} parent=0 // pred_fallthru
    _
  // Predicated region
  $region14: #{downsample_stack_forward.5} parent=0 // pred_check
    _
  $region15: #{downsample_stack_forward.5} parent=0 // pred_check_branch
    %16 = sbr.rel (0) target = $region17
  $region16: #{downsample_stack_forward.5} parent=0 // pred_region
    _
  $region17: #{downsample_stack_forward.5} parent=0 // pred_fallthru
    _
  %v17 = vld [vmem:[%s0] sm:$0xff]
  %v18 = vld [vmem:[%s0 + $0x8] sm:$0xff]
  %v19 = vld [vmem:[%s0 + $0x10] sm:$0xff]
  %v20 = vld [vmem:[%s0 + $0x18] sm:$0xff]
  %v21 = vld [vmem:[%s0 + $0x20] sm:$0xff]
  %v22 = vld [vmem:[%s0 + $0x28] sm:$0xff]
  %v23 = vld [vmem:[%s0 + $0x30] sm:$0xff]
  %v24 = vld [vmem:[%s0 + $0x38] sm:$0xff]
  %v25 = vld [vmem:[%s0 + $0x40] sm:$0xff]
  %v26 = vld [vmem:[%s0 + $0x48] sm:$0xff]
  %v27 = vld [vmem:[%s0 + $0x50] sm:$0xff]
  %v28 = vld [vmem:[%s0 + $0x58] sm:$0xff]
  %v29 = vld [vmem:[%s0 + $0x60] sm:$0xff]
  %v30 = vld [vmem:[%s0 + $0x68] sm:$0xff]
  %v31 = vld [vmem:[%s0 + $0x70] sm:$0xff]
  %v32 = vld [vmem:[%s0 + $0x78] sm:$0xff]
  %v33 = vld [vmem:[%s1] sm:$0xff]
  %v34 = vld [vmem:[%s1 + $0x8] sm:$0xff]
  %vm35 = vcmask 130048
  %v37 = vsel %vm35, %v17, 0
  %v40 = vsel %vm35, %v18, 0
  %v43 = vsel %vm35, %v19, 0
  %v46 = vsel %vm35, %v20, 0
  %v49 = vsel %vm35, %v21, 0
  %v52 = vsel %vm35, %v22, 0
  %v55 = vsel %vm35, %v23, 0
  %v58 = vsel %vm35, %v24, 0
  %v61 = vsel %vm35, %v25, 0
  %v64 = vsel %vm35, %v26, 0
  %v67 = vsel %vm35, %v27, 0
  %v70 = vsel %vm35, %v28, 0
  %v73 = vsel %vm35, %v29, 0
  %v76 = vsel %vm35, %v30, 0
  %v79 = vsel %vm35, %v31, 0
  %v82 = vsel %vm35, %v32, 0
  %84 = vmatpush.msra.mxu0 0.0
  %85 = vmatpush.msra.mxu0 0.0
  %86 = vmatpush.msra.mxu0 0.0
  %87 = vmatpush.msra.mxu0 0.0
  %88 = vmatpush.msra.mxu0 0.0
  %89 = vmatpush.msra.mxu0 0.0
  %90 = vmatpush.msra.mxu0 0.0
  %91 = vmatpush.msra.mxu0 0.0
  %92 = vmatpush.msra.mxu0 0.0
  %93 = vmatpush.msra.mxu0 0.0
  %94 = vmatpush.msra.mxu0 0.0
  %95 = vmatpush.msra.mxu0 0.0
  %96 = vmatpush.msra.mxu0 0.0
  %97 = vmatpush.msra.mxu0 0.0
  %98 = vmatpush.msra.mxu0 %v34
  %99 = vmatpush.msra.mxu0 %v33
  %100 = vmatmul.f32.gmra.mxu0 %v37
  %v101 = vpop.f32.mrf.mxu0
  %v102 = vadd.f32 0.0, %v101
  %103 = vmatmul.f32.gmra.mxu0 %v40
  %v104 = vpop.f32.mrf.mxu0
  %v105 = vadd.f32 0.0, %v104
  %106 = vmatmul.f32.gmra.mxu0 %v43
  %v107 = vpop.f32.mrf.mxu0
  %v108 = vadd.f32 0.0, %v107
  %109 = vmatmul.f32.gmra.mxu0 %v46
  %v110 = vpop.f32.mrf.mxu0
  %v111 = vadd.f32 0.0, %v110
  %112 = vmatmul.f32.gmra.mxu0 %v49
  %v113 = vpop.f32.mrf.mxu0
  %v114 = vadd.f32 0.0, %v113
  %115 = vmatmul.f32.gmra.mxu0 %v52
  %v116 = vpop.f32.mrf.mxu0
  %v117 = vadd.f32 0.0, %v116
  %118 = vmatmul.f32.gmra.mxu0 %v55
  %v119 = vpop.f32.mrf.mxu0
  %v120 = vadd.f32 0.0, %v119
  %121 = vmatmul.f32.gmra.mxu0 %v58
  %v122 = vpop.f32.mrf.mxu0
  %v123 = vadd.f32 0.0, %v122
  %124 = vmatmul.f32.gmra.mxu0 %v61
  %v125 = vpop.f32.mrf.mxu0
  %v126 = vadd.f32 0.0, %v125
  %127 = vmatmul.f32.gmra.mxu0 %v64
  %v128 = vpop.f32.mrf.mxu0
  %v129 = vadd.f32 0.0, %v128
  %130 = vmatmul.f32.gmra.mxu0 %v67
  %v131 = vpop.f32.mrf.mxu0
  %v132 = vadd.f32 0.0, %v131
  %133 = vmatmul.f32.gmra.mxu0 %v70
  %v134 = vpop.f32.mrf.mxu0
  %v135 = vadd.f32 0.0, %v134
  %136 = vmatmul.f32.gmra.mxu0 %v73
  %v137 = vpop.f32.mrf.mxu0
  %v138 = vadd.f32 0.0, %v137
  %139 = vmatmul.f32.gmra.mxu0 %v76
  %v140 = vpop.f32.mrf.mxu0
  %v141 = vadd.f32 0.0, %v140
  %142 = vmatmul.f32.gmra.mxu0 %v79
  %v143 = vpop.f32.mrf.mxu0
  %v144 = vadd.f32 0.0, %v143
  %145 = vmatmul.f32.gmra.mxu0 %v82
  %v146 = vpop.f32.mrf.mxu0
  %v147 = vadd.f32 0.0, %v146
  %148 = vdwg.mxu0
  %v149 = vld [vmem:[%s2] sm:$0x1]
  %v151 = vperm.slane %v149, 0
  %v153 = vmul.f32 %v102, %v151
  %v154 = vmul.f32 %v105, %v151
  %v155 = vmul.f32 %v108, %v151
  %v156 = vmul.f32 %v111, %v151
  %v157 = vmul.f32 %v114, %v151
  %v158 = vmul.f32 %v117, %v151
  %v159 = vmul.f32 %v120, %v151
  %v160 = vmul.f32 %v123, %v151
  %v161 = vmul.f32 %v126, %v151
  %v162 = vmul.f32 %v129, %v151
  %v163 = vmul.f32 %v132, %v151
  %v164 = vmul.f32 %v135, %v151
  %v165 = vmul.f32 %v138, %v151
  %v166 = vmul.f32 %v141, %v151
  %v167 = vmul.f32 %v144, %v151
  %v168 = vmul.f32 %v147, %v151
  %v169 = vld [vmem:[%s3] sm:$0x1]
  %v171 = vperm.slane %v169, 0
  %v173 = vadd.f32 %v153, %v171
  %v174 = vadd.f32 %v154, %v171
  %v175 = vadd.f32 %v155, %v171
  %v176 = vadd.f32 %v156, %v171
  %v177 = vadd.f32 %v157, %v171
  %v178 = vadd.f32 %v158, %v171
  %v179 = vadd.f32 %v159, %v171
  %v180 = vadd.f32 %v160, %v171
  %v181 = vadd.f32 %v161, %v171
  %v182 = vadd.f32 %v162, %v171
  %v183 = vadd.f32 %v163, %v171
  %v184 = vadd.f32 %v164, %v171
  %v185 = vadd.f32 %v165, %v171
  %v186 = vadd.f32 %v166, %v171
  %v187 = vadd.f32 %v167, %v171
  %v188 = vadd.f32 %v168, %v171
  %v189 = vmul.f32 %v173, 0.5
  %v190 = vmul.f32 %v174, 0.5
  %v191 = vmul.f32 %v175, 0.5
  %v192 = vmul.f32 %v176, 0.5
  %v193 = vmul.f32 %v177, 0.5
  %v194 = vmul.f32 %v178, 0.5
  %v195 = vmul.f32 %v179, 0.5
  %v196 = vmul.f32 %v180, 0.5
  %v197 = vmul.f32 %v181, 0.5
  %v198 = vmul.f32 %v182, 0.5
  %v199 = vmul.f32 %v183, 0.5
  %v200 = vmul.f32 %v184, 0.5
  %v201 = vmul.f32 %v185, 0.5
  %v202 = vmul.f32 %v186, 0.5
  %v203 = vmul.f32 %v187, 0.5
  %v204 = vmul.f32 %v188, 0.5
  %v205 = vmul.f32 %v173, 0.70710677
  %v206 = vmul.f32 %v174, 0.70710677
  %v207 = vmul.f32 %v175, 0.70710677
  %v208 = vmul.f32 %v176, 0.70710677
  %v209 = vmul.f32 %v177, 0.70710677
  %v210 = vmul.f32 %v178, 0.70710677
  %v211 = vmul.f32 %v179, 0.70710677
  %v212 = vmul.f32 %v180, 0.70710677
  %v213 = vmul.f32 %v181, 0.70710677
  %v214 = vmul.f32 %v182, 0.70710677
  %v215 = vmul.f32 %v183, 0.70710677
  %v216 = vmul.f32 %v184, 0.70710677
  %v217 = vmul.f32 %v185, 0.70710677
  %v218 = vmul.f32 %v186, 0.70710677
  %v219 = vmul.f32 %v187, 0.70710677
  %v220 = vmul.f32 %v188, 0.70710677
  %v221 = vmul.f32 %v205, %v205
  %v222 = vmin.f32 16.0, %v221
  %v223 = vmul.f32 %v222, 2.1237322e-06
  %v224 = vadd.f32 %v223, 0.00028619796
  %v225 = vmul.f32 %v222, %v224
  %v226 = vadd.f32 %v225, 0.0036580483
  %v227 = vmul.f32 %v222, %v226
  %v228 = vadd.f32 %v227, 0.05243302
  %v229 = vmul.f32 %v222, %v228
  %v230 = vadd.f32 %v229, 0.18741608
  %v231 = vmul.f32 %v222, %v230
  %v232 = vadd.f32 %v231, 1.1283791
  %v233 = vmul.f32 %v205, %v232
  %v234 = vmul.f32 %v222, 3.8918573e-05
  %v235 = vadd.f32 %v234, 0.001143296
  %v236 = vmul.f32 %v222, %v235
  %v237 = vadd.f32 %v236, 0.014752088
  %v238 = vmul.f32 %v222, %v237
  %v239 = vadd.f32 %v238, 0.112945676
  %v240 = vmul.f32 %v222, %v239
  %v241 = vadd.f32 %v240, 0.4994258
  %v242 = vmul.f32 %v222, %v241
  %v243 = vadd.f32 %v242, 1.0
  %v244 = vrcp.pop %v243
  %v245 = vmul.f32 %v243, %v244
  %v246 = vsub.f32 1.0, %v245
  %v247 = vmul.f32 %v244, %v246
  %v248 = vadd.f32 %v244, %v247
  %vm249 = vweird.f32 %v243
  %vm250 = vweird.f32 %v244
  %vm251 = vmor %vm249, %vm250
  %v252 = vsel %vm251, %v244, %v248
  %v253 = vand.u32 2147483647, %v243
  %vm254 = vcmp.eq.f32.partialorder %v253, 8.507059e+37
  %v255 = vand.u32 %v243, 2147483648
  %v256 = vor.u32 1.1754944e-38, %v255
  %v257 = vsel %vm254, %v256, %v252
  %v258 = vmul.f32 %v233, %v257
  %v259 = vmin.f32 %v258, 1.0
  %v260 = vmax.f32 %v259, -1.0
  %v261 = vmul.f32 %v206, %v206
  %v262 = vmin.f32 16.0, %v261
  %v263 = vmul.f32 %v262, 2.1237322e-06
  %v264 = vadd.f32 %v263, 0.00028619796
  %v265 = vmul.f32 %v262, %v264
  %v266 = vadd.f32 %v265, 0.0036580483
  %v267 = vmul.f32 %v262, %v266
  %v268 = vadd.f32 %v267, 0.05243302
  %v269 = vmul.f32 %v262, %v268
  %v270 = vadd.f32 %v269, 0.18741608
  %v271 = vmul.f32 %v262, %v270
  %v272 = vadd.f32 %v271, 1.1283791
  %v273 = vmul.f32 %v206, %v272
  %v274 = vmul.f32 %v262, 3.8918573e-05
  %v275 = vadd.f32 %v274, 0.001143296
  %v276 = vmul.f32 %v262, %v275
  %v277 = vadd.f32 %v276, 0.014752088
  %v278 = vmul.f32 %v262, %v277
  %v279 = vadd.f32 %v278, 0.112945676
  %v280 = vmul.f32 %v262, %v279
  %v281 = vadd.f32 %v280, 0.4994258
  %v282 = vmul.f32 %v262, %v281
  %v283 = vadd.f32 %v282, 1.0
  %v284 = vrcp.pop %v283
  %v285 = vmul.f32 %v283, %v284
  %v286 = vsub.f32 1.0, %v285
  %v287 = vmul.f32 %v284, %v286
  %v288 = vadd.f32 %v284, %v287
  %vm289 = vweird.f32 %v283
  %vm290 = vweird.f32 %v284
  %vm291 = vmor %vm289, %vm290
  %v292 = vsel %vm291, %v284, %v288
  %v293 = vand.u32 2147483647, %v283
  %vm294 = vcmp.eq.f32.partialorder %v293, 8.507059e+37
  %v295 = vand.u32 %v283, 2147483648
  %v296 = vor.u32 1.1754944e-38, %v295
  %v297 = vsel %vm294, %v296, %v292
  %v298 = vmul.f32 %v273, %v297
  %v299 = vmin.f32 %v298, 1.0
  %v300 = vmax.f32 %v299, -1.0
  %v301 = vmul.f32 %v207, %v207
  %v302 = vmin.f32 16.0, %v301
  %v303 = vmul.f32 %v302, 2.1237322e-06
  %v304 = vadd.f32 %v303, 0.00028619796
  %v305 = vmul.f32 %v302, %v304
  %v306 = vadd.f32 %v305, 0.0036580483
  %v307 = vmul.f32 %v302, %v306
  %v308 = vadd.f32 %v307, 0.05243302
  %v309 = vmul.f32 %v302, %v308
  %v310 = vadd.f32 %v309, 0.18741608
  %v311 = vmul.f32 %v302, %v310
  %v312 = vadd.f32 %v311, 1.1283791
  %v313 = vmul.f32 %v207, %v312
  %v314 = vmul.f32 %v302, 3.8918573e-05
  %v315 = vadd.f32 %v314, 0.001143296
  %v316 = vmul.f32 %v302, %v315
  %v317 = vadd.f32 %v316, 0.014752088
  %v318 = vmul.f32 %v302, %v317
  %v319 = vadd.f32 %v318, 0.112945676
  %v320 = vmul.f32 %v302, %v319
  %v321 = vadd.f32 %v320, 0.4994258
  %v322 = vmul.f32 %v302, %v321
  %v323 = vadd.f32 %v322, 1.0
  %v324 = vrcp.pop %v323
  %v325 = vmul.f32 %v323, %v324
  %v326 = vsub.f32 1.0, %v325
  %v327 = vmul.f32 %v324, %v326
  %v328 = vadd.f32 %v324, %v327
  %vm329 = vweird.f32 %v323
  %vm330 = vweird.f32 %v324
  %vm331 = vmor %vm329, %vm330
  %v332 = vsel %vm331, %v324, %v328
  %v333 = vand.u32 2147483647, %v323
  %vm334 = vcmp.eq.f32.partialorder %v333, 8.507059e+37
  %v335 = vand.u32 %v323, 2147483648
  %v336 = vor.u32 1.1754944e-38, %v335
  %v337 = vsel %vm334, %v336, %v332
  %v338 = vmul.f32 %v313, %v337
  %v339 = vmin.f32 %v338, 1.0
  %v340 = vmax.f32 %v339, -1.0
  %v341 = vmul.f32 %v208, %v208
  %v342 = vmin.f32 16.0, %v341
  %v343 = vmul.f32 %v342, 2.1237322e-06
  %v344 = vadd.f32 %v343, 0.00028619796
  %v345 = vmul.f32 %v342, %v344
  %v346 = vadd.f32 %v345, 0.0036580483
  %v347 = vmul.f32 %v342, %v346
  %v348 = vadd.f32 %v347, 0.05243302
  %v349 = vmul.f32 %v342, %v348
  %v350 = vadd.f32 %v349, 0.18741608
  %v351 = vmul.f32 %v342, %v350
  %v352 = vadd.f32 %v351, 1.1283791
  %v353 = vmul.f32 %v208, %v352
  %v354 = vmul.f32 %v342, 3.8918573e-05
  %v355 = vadd.f32 %v354, 0.001143296
  %v356 = vmul.f32 %v342, %v355
  %v357 = vadd.f32 %v356, 0.014752088
  %v358 = vmul.f32 %v342, %v357
  %v359 = vadd.f32 %v358, 0.112945676
  %v360 = vmul.f32 %v342, %v359
  %v361 = vadd.f32 %v360, 0.4994258
  %v362 = vmul.f32 %v342, %v361
  %v363 = vadd.f32 %v362, 1.0
  %v364 = vrcp.pop %v363
  %v365 = vmul.f32 %v363, %v364
  %v366 = vsub.f32 1.0, %v365
  %v367 = vmul.f32 %v364, %v366
  %v368 = vadd.f32 %v364, %v367
  %vm369 = vweird.f32 %v363
  %vm370 = vweird.f32 %v364
  %vm371 = vmor %vm369, %vm370
  %v372 = vsel %vm371, %v364, %v368
  %v373 = vand.u32 2147483647, %v363
  %vm374 = vcmp.eq.f32.partialorder %v373, 8.507059e+37
  %v375 = vand.u32 %v363, 2147483648
  %v376 = vor.u32 1.1754944e-38, %v375
  %v377 = vsel %vm374, %v376, %v372
  %v378 = vmul.f32 %v353, %v377
  %v379 = vmin.f32 %v378, 1.0
  %v380 = vmax.f32 %v379, -1.0
  %v381 = vmul.f32 %v209, %v209
  %v382 = vmin.f32 16.0, %v381
  %v383 = vmul.f32 %v382, 2.1237322e-06
  %v384 = vadd.f32 %v383, 0.00028619796
  %v385 = vmul.f32 %v382, %v384
  %v386 = vadd.f32 %v385, 0.0036580483
  %v387 = vmul.f32 %v382, %v386
  %v388 = vadd.f32 %v387, 0.05243302
  %v389 = vmul.f32 %v382, %v388
  %v390 = vadd.f32 %v389, 0.18741608
  %v391 = vmul.f32 %v382, %v390
  %v392 = vadd.f32 %v391, 1.1283791
  %v393 = vmul.f32 %v209, %v392
  %v394 = vmul.f32 %v382, 3.8918573e-05
  %v395 = vadd.f32 %v394, 0.001143296
  %v396 = vmul.f32 %v382, %v395
  %v397 = vadd.f32 %v396, 0.014752088
  %v398 = vmul.f32 %v382, %v397
  %v399 = vadd.f32 %v398, 0.112945676
  %v400 = vmul.f32 %v382, %v399
  %v401 = vadd.f32 %v400, 0.4994258
  %v402 = vmul.f32 %v382, %v401
  %v403 = vadd.f32 %v402, 1.0
  %v404 = vrcp.pop %v403
  %v405 = vmul.f32 %v403, %v404
  %v406 = vsub.f32 1.0, %v405
  %v407 = vmul.f32 %v404, %v406
  %v408 = vadd.f32 %v404, %v407
  %vm409 = vweird.f32 %v403
  %vm410 = vweird.f32 %v404
  %vm411 = vmor %vm409, %vm410
  %v412 = vsel %vm411, %v404, %v408
  %v413 = vand.u32 2147483647, %v403
  %vm414 = vcmp.eq.f32.partialorder %v413, 8.507059e+37
  %v415 = vand.u32 %v403, 2147483648
  %v416 = vor.u32 1.1754944e-38, %v415
  %v417 = vsel %vm414, %v416, %v412
  %v418 = vmul.f32 %v393, %v417
  %v419 = vmin.f32 %v418, 1.0
  %v420 = vmax.f32 %v419, -1.0
  %v421 = vmul.f32 %v210, %v210
  %v422 = vmin.f32 16.0, %v421
  %v423 = vmul.f32 %v422, 2.1237322e-06
  %v424 = vadd.f32 %v423, 0.00028619796
  %v425 = vmul.f32 %v422, %v424
  %v426 = vadd.f32 %v425, 0.0036580483
  %v427 = vmul.f32 %v422, %v426
  %v428 = vadd.f32 %v427, 0.05243302
  %v429 = vmul.f32 %v422, %v428
  %v430 = vadd.f32 %v429, 0.18741608
  %v431 = vmul.f32 %v422, %v430
  %v432 = vadd.f32 %v431, 1.1283791
  %v433 = vmul.f32 %v210, %v432
  %v434 = vmul.f32 %v422, 3.8918573e-05
  %v435 = vadd.f32 %v434, 0.001143296
  %v436 = vmul.f32 %v422, %v435
  %v437 = vadd.f32 %v436, 0.014752088
  %v438 = vmul.f32 %v422, %v437
  %v439 = vadd.f32 %v438, 0.112945676
  %v440 = vmul.f32 %v422, %v439
  %v441 = vadd.f32 %v440, 0.4994258
  %v442 = vmul.f32 %v422, %v441
  %v443 = vadd.f32 %v442, 1.0
  %v444 = vrcp.pop %v443
  %v445 = vmul.f32 %v443, %v444
  %v446 = vsub.f32 1.0, %v445
  %v447 = vmul.f32 %v444, %v446
  %v448 = vadd.f32 %v444, %v447
  %vm449 = vweird.f32 %v443
  %vm450 = vweird.f32 %v444
  %vm451 = vmor %vm449, %vm450
  %v452 = vsel %vm451, %v444, %v448
  %v453 = vand.u32 2147483647, %v443
  %vm454 = vcmp.eq.f32.partialorder %v453, 8.507059e+37
  %v455 = vand.u32 %v443, 2147483648
  %v456 = vor.u32 1.1754944e-38, %v455
  %v457 = vsel %vm454, %v456, %v452
  %v458 = vmul.f32 %v433, %v457
  %v459 = vmin.f32 %v458, 1.0
  %v460 = vmax.f32 %v459, -1.0
  %v461 = vmul.f32 %v211, %v211
  %v462 = vmin.f32 16.0, %v461
  %v463 = vmul.f32 %v462, 2.1237322e-06
  %v464 = vadd.f32 %v463, 0.00028619796
  %v465 = vmul.f32 %v462, %v464
  %v466 = vadd.f32 %v465, 0.0036580483
  %v467 = vmul.f32 %v462, %v466
  %v468 = vadd.f32 %v467, 0.05243302
  %v469 = vmul.f32 %v462, %v468
  %v470 = vadd.f32 %v469, 0.18741608
  %v471 = vmul.f32 %v462, %v470
  %v472 = vadd.f32 %v471, 1.1283791
  %v473 = vmul.f32 %v211, %v472
  %v474 = vmul.f32 %v462, 3.8918573e-05
  %v475 = vadd.f32 %v474, 0.001143296
  %v476 = vmul.f32 %v462, %v475
  %v477 = vadd.f32 %v476, 0.014752088
  %v478 = vmul.f32 %v462, %v477
  %v479 = vadd.f32 %v478, 0.112945676
  %v480 = vmul.f32 %v462, %v479
  %v481 = vadd.f32 %v480, 0.4994258
  %v482 = vmul.f32 %v462, %v481
  %v483 = vadd.f32 %v482, 1.0
  %v484 = vrcp.pop %v483
  %v485 = vmul.f32 %v483, %v484
  %v486 = vsub.f32 1.0, %v485
  %v487 = vmul.f32 %v484, %v486
  %v488 = vadd.f32 %v484, %v487
  %vm489 = vweird.f32 %v483
  %vm490 = vweird.f32 %v484
  %vm491 = vmor %vm489, %vm490
  %v492 = vsel %vm491, %v484, %v488
  %v493 = vand.u32 2147483647, %v483
  %vm494 = vcmp.eq.f32.partialorder %v493, 8.507059e+37
  %v495 = vand.u32 %v483, 2147483648
  %v496 = vor.u32 1.1754944e-38, %v495
  %v497 = vsel %vm494, %v496, %v492
  %v498 = vmul.f32 %v473, %v497
  %v499 = vmin.f32 %v498, 1.0
  %v500 = vmax.f32 %v499, -1.0
  %v501 = vmul.f32 %v212, %v212
  %v502 = vmin.f32 16.0, %v501
  %v503 = vmul.f32 %v502, 2.1237322e-06
  %v504 = vadd.f32 %v503, 0.00028619796
  %v505 = vmul.f32 %v502, %v504
  %v506 = vadd.f32 %v505, 0.0036580483
  %v507 = vmul.f32 %v502, %v506
  %v508 = vadd.f32 %v507, 0.05243302
  %v509 = vmul.f32 %v502, %v508
  %v510 = vadd.f32 %v509, 0.18741608
  %v511 = vmul.f32 %v502, %v510
  %v512 = vadd.f32 %v511, 1.1283791
  %v513 = vmul.f32 %v212, %v512
  %v514 = vmul.f32 %v502, 3.8918573e-05
  %v515 = vadd.f32 %v514, 0.001143296
  %v516 = vmul.f32 %v502, %v515
  %v517 = vadd.f32 %v516, 0.014752088
  %v518 = vmul.f32 %v502, %v517
  %v519 = vadd.f32 %v518, 0.112945676
  %v520 = vmul.f32 %v502, %v519
  %v521 = vadd.f32 %v520, 0.4994258
  %v522 = vmul.f32 %v502, %v521
  %v523 = vadd.f32 %v522, 1.0
  %v524 = vrcp.pop %v523
  %v525 = vmul.f32 %v523, %v524
  %v526 = vsub.f32 1.0, %v525
  %v527 = vmul.f32 %v524, %v526
  %v528 = vadd.f32 %v524, %v527
  %vm529 = vweird.f32 %v523
  %vm530 = vweird.f32 %v524
  %vm531 = vmor %vm529, %vm530
  %v532 = vsel %vm531, %v524, %v528
  %v533 = vand.u32 2147483647, %v523
  %vm534 = vcmp.eq.f32.partialorder %v533, 8.507059e+37
  %v535 = vand.u32 %v523, 2147483648
  %v536 = vor.u32 1.1754944e-38, %v535
  %v537 = vsel %vm534, %v536, %v532
  %v538 = vmul.f32 %v513, %v537
  %v539 = vmin.f32 %v538, 1.0
  %v540 = vmax.f32 %v539, -1.0
  %v541 = vmul.f32 %v213, %v213
  %v542 = vmin.f32 16.0, %v541
  %v543 = vmul.f32 %v542, 2.1237322e-06
  %v544 = vadd.f32 %v543, 0.00028619796
  %v545 = vmul.f32 %v542, %v544
  %v546 = vadd.f32 %v545, 0.0036580483
  %v547 = vmul.f32 %v542, %v546
  %v548 = vadd.f32 %v547, 0.05243302
  %v549 = vmul.f32 %v542, %v548
  %v550 = vadd.f32 %v549, 0.18741608
  %v551 = vmul.f32 %v542, %v550
  %v552 = vadd.f32 %v551, 1.1283791
  %v553 = vmul.f32 %v213, %v552
  %v554 = vmul.f32 %v542, 3.8918573e-05
  %v555 = vadd.f32 %v554, 0.001143296
  %v556 = vmul.f32 %v542, %v555
  %v557 = vadd.f32 %v556, 0.014752088
  %v558 = vmul.f32 %v542, %v557
  %v559 = vadd.f32 %v558, 0.112945676
  %v560 = vmul.f32 %v542, %v559
  %v561 = vadd.f32 %v560, 0.4994258
  %v562 = vmul.f32 %v542, %v561
  %v563 = vadd.f32 %v562, 1.0
  %v564 = vrcp.pop %v563
  %v565 = vmul.f32 %v563, %v564
  %v566 = vsub.f32 1.0, %v565
  %v567 = vmul.f32 %v564, %v566
  %v568 = vadd.f32 %v564, %v567
  %vm569 = vweird.f32 %v563
  %vm570 = vweird.f32 %v564
  %vm571 = vmor %vm569, %vm570
  %v572 = vsel %vm571, %v564, %v568
  %v573 = vand.u32 2147483647, %v563
  %vm574 = vcmp.eq.f32.partialorder %v573, 8.507059e+37
  %v575 = vand.u32 %v563, 2147483648
  %v576 = vor.u32 1.1754944e-38, %v575
  %v577 = vsel %vm574, %v576, %v572
  %v578 = vmul.f32 %v553, %v577
  %v579 = vmin.f32 %v578, 1.0
  %v580 = vmax.f32 %v579, -1.0
  %v581 = vmul.f32 %v214, %v214
  %v582 = vmin.f32 16.0, %v581
  %v583 = vmul.f32 %v582, 2.1237322e-06
  %v584 = vadd.f32 %v583, 0.00028619796
  %v585 = vmul.f32 %v582, %v584
  %v586 = vadd.f32 %v585, 0.0036580483
  %v587 = vmul.f32 %v582, %v586
  %v588 = vadd.f32 %v587, 0.05243302
  %v589 = vmul.f32 %v582, %v588
  %v590 = vadd.f32 %v589, 0.18741608
  %v591 = vmul.f32 %v582, %v590
  %v592 = vadd.f32 %v591, 1.1283791
  %v593 = vmul.f32 %v214, %v592
  %v594 = vmul.f32 %v582, 3.8918573e-05
  %v595 = vadd.f32 %v594, 0.001143296
  %v596 = vmul.f32 %v582, %v595
  %v597 = vadd.f32 %v596, 0.014752088
  %v598 = vmul.f32 %v582, %v597
  %v599 = vadd.f32 %v598, 0.112945676
  %v600 = vmul.f32 %v582, %v599
  %v601 = vadd.f32 %v600, 0.4994258
  %v602 = vmul.f32 %v582, %v601
  %v603 = vadd.f32 %v602, 1.0
  %v604 = vrcp.pop %v603
  %v605 = vmul.f32 %v603, %v604
  %v606 = vsub.f32 1.0, %v605
  %v607 = vmul.f32 %v604, %v606
  %v608 = vadd.f32 %v604, %v607
  %vm609 = vweird.f32 %v603
  %vm610 = vweird.f32 %v604
  %vm611 = vmor %vm609, %vm610
  %v612 = vsel %vm611, %v604, %v608
  %v613 = vand.u32 2147483647, %v603
  %vm614 = vcmp.eq.f32.partialorder %v613, 8.507059e+37
  %v615 = vand.u32 %v603, 2147483648
  %v616 = vor.u32 1.1754944e-38, %v615
  %v617 = vsel %vm614, %v616, %v612
  %v618 = vmul.f32 %v593, %v617
  %v619 = vmin.f32 %v618, 1.0
  %v620 = vmax.f32 %v619, -1.0
  %v621 = vmul.f32 %v215, %v215
  %v622 = vmin.f32 16.0, %v621
  %v623 = vmul.f32 %v622, 2.1237322e-06
  %v624 = vadd.f32 %v623, 0.00028619796
  %v625 = vmul.f32 %v622, %v624
  %v626 = vadd.f32 %v625, 0.0036580483
  %v627 = vmul.f32 %v622, %v626
  %v628 = vadd.f32 %v627, 0.05243302
  %v629 = vmul.f32 %v622, %v628
  %v630 = vadd.f32 %v629, 0.18741608
  %v631 = vmul.f32 %v622, %v630
  %v632 = vadd.f32 %v631, 1.1283791
  %v633 = vmul.f32 %v215, %v632
  %v634 = vmul.f32 %v622, 3.8918573e-05
  %v635 = vadd.f32 %v634, 0.001143296
  %v636 = vmul.f32 %v622, %v635
  %v637 = vadd.f32 %v636, 0.014752088
  %v638 = vmul.f32 %v622, %v637
  %v639 = vadd.f32 %v638, 0.112945676
  %v640 = vmul.f32 %v622, %v639
  %v641 = vadd.f32 %v640, 0.4994258
  %v642 = vmul.f32 %v622, %v641
  %v643 = vadd.f32 %v642, 1.0
  %v644 = vrcp.pop %v643
  %v645 = vmul.f32 %v643, %v644
  %v646 = vsub.f32 1.0, %v645
  %v647 = vmul.f32 %v644, %v646
  %v648 = vadd.f32 %v644, %v647
  %vm649 = vweird.f32 %v643
  %vm650 = vweird.f32 %v644
  %vm651 = vmor %vm649, %vm650
  %v652 = vsel %vm651, %v644, %v648
  %v653 = vand.u32 2147483647, %v643
  %vm654 = vcmp.eq.f32.partialorder %v653, 8.507059e+37
  %v655 = vand.u32 %v643, 2147483648
  %v656 = vor.u32 1.1754944e-38, %v655
  %v657 = vsel %vm654, %v656, %v652
  %v658 = vmul.f32 %v633, %v657
  %v659 = vmin.f32 %v658, 1.0
  %v660 = vmax.f32 %v659, -1.0
  %v661 = vmul.f32 %v216, %v216
  %v662 = vmin.f32 16.0, %v661
  %v663 = vmul.f32 %v662, 2.1237322e-06
  %v664 = vadd.f32 %v663, 0.00028619796
  %v665 = vmul.f32 %v662, %v664
  %v666 = vadd.f32 %v665, 0.0036580483
  %v667 = vmul.f32 %v662, %v666
  %v668 = vadd.f32 %v667, 0.05243302
  %v669 = vmul.f32 %v662, %v668
  %v670 = vadd.f32 %v669, 0.18741608
  %v671 = vmul.f32 %v662, %v670
  %v672 = vadd.f32 %v671, 1.1283791
  %v673 = vmul.f32 %v216, %v672
  %v674 = vmul.f32 %v662, 3.8918573e-05
  %v675 = vadd.f32 %v674, 0.001143296
  %v676 = vmul.f32 %v662, %v675
  %v677 = vadd.f32 %v676, 0.014752088
  %v678 = vmul.f32 %v662, %v677
  %v679 = vadd.f32 %v678, 0.112945676
  %v680 = vmul.f32 %v662, %v679
  %v681 = vadd.f32 %v680, 0.4994258
  %v682 = vmul.f32 %v662, %v681
  %v683 = vadd.f32 %v682, 1.0
  %v684 = vrcp.pop %v683
  %v685 = vmul.f32 %v683, %v684
  %v686 = vsub.f32 1.0, %v685
  %v687 = vmul.f32 %v684, %v686
  %v688 = vadd.f32 %v684, %v687
  %vm689 = vweird.f32 %v683
  %vm690 = vweird.f32 %v684
  %vm691 = vmor %vm689, %vm690
  %v692 = vsel %vm691, %v684, %v688
  %v693 = vand.u32 2147483647, %v683
  %vm694 = vcmp.eq.f32.partialorder %v693, 8.507059e+37
  %v695 = vand.u32 %v683, 2147483648
  %v696 = vor.u32 1.1754944e-38, %v695
  %v697 = vsel %vm694, %v696, %v692
  %v698 = vmul.f32 %v673, %v697
  %v699 = vmin.f32 %v698, 1.0
  %v700 = vmax.f32 %v699, -1.0
  %v701 = vmul.f32 %v217, %v217
  %v702 = vmin.f32 16.0, %v701
  %v703 = vmul.f32 %v702, 2.1237322e-06
  %v704 = vadd.f32 %v703, 0.00028619796
  %v705 = vmul.f32 %v702, %v704
  %v706 = vadd.f32 %v705, 0.0036580483
  %v707 = vmul.f32 %v702, %v706
  %v708 = vadd.f32 %v707, 0.05243302
  %v709 = vmul.f32 %v702, %v708
  %v710 = vadd.f32 %v709, 0.18741608
  %v711 = vmul.f32 %v702, %v710
  %v712 = vadd.f32 %v711, 1.1283791
  %v713 = vmul.f32 %v217, %v712
  %v714 = vmul.f32 %v702, 3.8918573e-05
  %v715 = vadd.f32 %v714, 0.001143296
  %v716 = vmul.f32 %v702, %v715
  %v717 = vadd.f32 %v716, 0.014752088
  %v718 = vmul.f32 %v702, %v717
  %v719 = vadd.f32 %v718, 0.112945676
  %v720 = vmul.f32 %v702, %v719
  %v721 = vadd.f32 %v720, 0.4994258
  %v722 = vmul.f32 %v702, %v721
  %v723 = vadd.f32 %v722, 1.0
  %v724 = vrcp.pop %v723
  %v725 = vmul.f32 %v723, %v724
  %v726 = vsub.f32 1.0, %v725
  %v727 = vmul.f32 %v724, %v726
  %v728 = vadd.f32 %v724, %v727
  %vm729 = vweird.f32 %v723
  %vm730 = vweird.f32 %v724
  %vm731 = vmor %vm729, %vm730
  %v732 = vsel %vm731, %v724, %v728
  %v733 = vand.u32 2147483647, %v723
  %vm734 = vcmp.eq.f32.partialorder %v733, 8.507059e+37
  %v735 = vand.u32 %v723, 2147483648
  %v736 = vor.u32 1.1754944e-38, %v735
  %v737 = vsel %vm734, %v736, %v732
  %v738 = vmul.f32 %v713, %v737
  %v739 = vmin.f32 %v738, 1.0
  %v740 = vmax.f32 %v739, -1.0
  %v741 = vmul.f32 %v218, %v218
  %v742 = vmin.f32 16.0, %v741
  %v743 = vmul.f32 %v742, 2.1237322e-06
  %v744 = vadd.f32 %v743, 0.00028619796
  %v745 = vmul.f32 %v742, %v744
  %v746 = vadd.f32 %v745, 0.0036580483
  %v747 = vmul.f32 %v742, %v746
  %v748 = vadd.f32 %v747, 0.05243302
  %v749 = vmul.f32 %v742, %v748
  %v750 = vadd.f32 %v749, 0.18741608
  %v751 = vmul.f32 %v742, %v750
  %v752 = vadd.f32 %v751, 1.1283791
  %v753 = vmul.f32 %v218, %v752
  %v754 = vmul.f32 %v742, 3.8918573e-05
  %v755 = vadd.f32 %v754, 0.001143296
  %v756 = vmul.f32 %v742, %v755
  %v757 = vadd.f32 %v756, 0.014752088
  %v758 = vmul.f32 %v742, %v757
  %v759 = vadd.f32 %v758, 0.112945676
  %v760 = vmul.f32 %v742, %v759
  %v761 = vadd.f32 %v760, 0.4994258
  %v762 = vmul.f32 %v742, %v761
  %v763 = vadd.f32 %v762, 1.0
  %v764 = vrcp.pop %v763
  %v765 = vmul.f32 %v763, %v764
  %v766 = vsub.f32 1.0, %v765
  %v767 = vmul.f32 %v764, %v766
  %v768 = vadd.f32 %v764, %v767
  %vm769 = vweird.f32 %v763
  %vm770 = vweird.f32 %v764
  %vm771 = vmor %vm769, %vm770
  %v772 = vsel %vm771, %v764, %v768
  %v773 = vand.u32 2147483647, %v763
  %vm774 = vcmp.eq.f32.partialorder %v773, 8.507059e+37
  %v775 = vand.u32 %v763, 2147483648
  %v776 = vor.u32 1.1754944e-38, %v775
  %v777 = vsel %vm774, %v776, %v772
  %v778 = vmul.f32 %v753, %v777
  %v779 = vmin.f32 %v778, 1.0
  %v780 = vmax.f32 %v779, -1.0
  %v781 = vmul.f32 %v219, %v219
  %v782 = vmin.f32 16.0, %v781
  %v783 = vmul.f32 %v782, 2.1237322e-06
  %v784 = vadd.f32 %v783, 0.00028619796
  %v785 = vmul.f32 %v782, %v784
  %v786 = vadd.f32 %v785, 0.0036580483
  %v787 = vmul.f32 %v782, %v786
  %v788 = vadd.f32 %v787, 0.05243302
  %v789 = vmul.f32 %v782, %v788
  %v790 = vadd.f32 %v789, 0.18741608
  %v791 = vmul.f32 %v782, %v790
  %v792 = vadd.f32 %v791, 1.1283791
  %v793 = vmul.f32 %v219, %v792
  %v794 = vmul.f32 %v782, 3.8918573e-05
  %v795 = vadd.f32 %v794, 0.001143296
  %v796 = vmul.f32 %v782, %v795
  %v797 = vadd.f32 %v796, 0.014752088
  %v798 = vmul.f32 %v782, %v797
  %v799 = vadd.f32 %v798, 0.112945676
  %v800 = vmul.f32 %v782, %v799
  %v801 = vadd.f32 %v800, 0.4994258
  %v802 = vmul.f32 %v782, %v801
  %v803 = vadd.f32 %v802, 1.0
  %v804 = vrcp.pop %v803
  %v805 = vmul.f32 %v803, %v804
  %v806 = vsub.f32 1.0, %v805
  %v807 = vmul.f32 %v804, %v806
  %v808 = vadd.f32 %v804, %v807
  %vm809 = vweird.f32 %v803
  %vm810 = vweird.f32 %v804
  %vm811 = vmor %vm809, %vm810
  %v812 = vsel %vm811, %v804, %v808
  %v813 = vand.u32 2147483647, %v803
  %vm814 = vcmp.eq.f32.partialorder %v813, 8.507059e+37
  %v815 = vand.u32 %v803, 2147483648
  %v816 = vor.u32 1.1754944e-38, %v815
  %v817 = vsel %vm814, %v816, %v812
  %v818 = vmul.f32 %v793, %v817
  %v819 = vmin.f32 %v818, 1.0
  %v820 = vmax.f32 %v819, -1.0
  %v821 = vmul.f32 %v220, %v220
  %v822 = vmin.f32 16.0, %v821
  %v823 = vmul.f32 %v822, 2.1237322e-06
  %v824 = vadd.f32 %v823, 0.00028619796
  %v825 = vmul.f32 %v822, %v824
  %v826 = vadd.f32 %v825, 0.0036580483
  %v827 = vmul.f32 %v822, %v826
  %v828 = vadd.f32 %v827, 0.05243302
  %v829 = vmul.f32 %v822, %v828
  %v830 = vadd.f32 %v829, 0.18741608
  %v831 = vmul.f32 %v822, %v830
  %v832 = vadd.f32 %v831, 1.1283791
  %v833 = vmul.f32 %v220, %v832
  %v834 = vmul.f32 %v822, 3.8918573e-05
  %v835 = vadd.f32 %v834, 0.001143296
  %v836 = vmul.f32 %v822, %v835
  %v837 = vadd.f32 %v836, 0.014752088
  %v838 = vmul.f32 %v822, %v837
  %v839 = vadd.f32 %v838, 0.112945676
  %v840 = vmul.f32 %v822, %v839
  %v841 = vadd.f32 %v840, 0.4994258
  %v842 = vmul.f32 %v822, %v841
  %v843 = vadd.f32 %v842, 1.0
  %v844 = vrcp.pop %v843
  %v845 = vmul.f32 %v843, %v844
  %v846 = vsub.f32 1.0, %v845
  %v847 = vmul.f32 %v844, %v846
  %v848 = vadd.f32 %v844, %v847
  %vm849 = vweird.f32 %v843
  %vm850 = vweird.f32 %v844
  %vm851 = vmor %vm849, %vm850
  %v852 = vsel %vm851, %v844, %v848
  %v853 = vand.u32 2147483647, %v843
  %vm854 = vcmp.eq.f32.partialorder %v853, 8.507059e+37
  %v855 = vand.u32 %v843, 2147483648
  %v856 = vor.u32 1.1754944e-38, %v855
  %v857 = vsel %vm854, %v856, %v852
  %v858 = vmul.f32 %v833, %v857
  %v859 = vmin.f32 %v858, 1.0
  %v860 = vmax.f32 %v859, -1.0
  %v861 = vadd.f32 %v260, 1.0
  %v862 = vadd.f32 %v300, 1.0
  %v863 = vadd.f32 %v340, 1.0
  %v864 = vadd.f32 %v380, 1.0
  %v865 = vadd.f32 %v420, 1.0
  %v866 = vadd.f32 %v460, 1.0
  %v867 = vadd.f32 %v500, 1.0
  %v868 = vadd.f32 %v540, 1.0
  %v869 = vadd.f32 %v580, 1.0
  %v870 = vadd.f32 %v620, 1.0
  %v871 = vadd.f32 %v660, 1.0
  %v872 = vadd.f32 %v700, 1.0
  %v873 = vadd.f32 %v740, 1.0
  %v874 = vadd.f32 %v780, 1.0
  %v875 = vadd.f32 %v820, 1.0
  %v876 = vadd.f32 %v860, 1.0
  %v877 = vmul.f32 %v189, %v861
  %v878 = vmul.f32 %v190, %v862
  %v879 = vmul.f32 %v191, %v863
  %v880 = vmul.f32 %v192, %v864
  %v881 = vmul.f32 %v193, %v865
  %v882 = vmul.f32 %v194, %v866
  %v883 = vmul.f32 %v195, %v867
  %v884 = vmul.f32 %v196, %v868
  %v885 = vmul.f32 %v197, %v869
  %v886 = vmul.f32 %v198, %v870
  %v887 = vmul.f32 %v199, %v871
  %v888 = vmul.f32 %v200, %v872
  %v889 = vmul.f32 %v201, %v873
  %v890 = vmul.f32 %v202, %v874
  %v891 = vmul.f32 %v203, %v875
  %v892 = vmul.f32 %v204, %v876
  %893 = vst [vmem:[%s4] sm:$0xff] %v877
  %894 = vst [vmem:[%s4 + $0x8] sm:$0xff] %v878
  %895 = vst [vmem:[%s4 + $0x10] sm:$0xff] %v879
  %896 = vst [vmem:[%s4 + $0x18] sm:$0xff] %v880
  %897 = vst [vmem:[%s4 + $0x20] sm:$0xff] %v881
  %898 = vst [vmem:[%s4 + $0x28] sm:$0xff] %v882
  %899 = vst [vmem:[%s4 + $0x30] sm:$0xff] %v883
  %900 = vst [vmem:[%s4 + $0x38] sm:$0xff] %v884
  %901 = vst [vmem:[%s4 + $0x40] sm:$0xff] %v885
  %902 = vst [vmem:[%s4 + $0x48] sm:$0xff] %v886
  %903 = vst [vmem:[%s4 + $0x50] sm:$0xff] %v887
  %904 = vst [vmem:[%s4 + $0x58] sm:$0xff] %v888
  %905 = vst [vmem:[%s4 + $0x60] sm:$0xff] %v889
  %906 = vst [vmem:[%s4 + $0x68] sm:$0xff] %v890
  %907 = vst [vmem:[%s4 + $0x70] sm:$0xff] %v891
  %908 = vst [vmem:[%s4 + $0x78] sm:$0xff] %v892
  // Predicated region
  $region18: #{downsample_stack_forward.5} parent=0 // pred_check
    _
  $region19: #{downsample_stack_forward.5} parent=0 // pred_check_branch
    %910 = sbr.rel (0) target = $region21
  $region20: #{downsample_stack_forward.5} parent=0 // pred_region
    _
  $region21: #{downsample_stack_forward.5} parent=0 // pred_fallthru
    _
  // Predicated region
  $region22: #{downsample_stack_forward.5} parent=0 // pred_check
    _
  $region23: #{downsample_stack_forward.5} parent=0 // pred_check_branch
    %912 = sbr.rel (0) target = $region25
  $region24: #{downsample_stack_forward.5} parent=0 // pred_region
    _
  $region25: #{downsample_stack_forward.5} parent=0 // pred_fallthru
    _

// kernel: downsample_stack_forward.6
$region0: #{downsample_stack_forward.6}
  #allocation0 [shape = 'u32[]', space=smem, size = 0x4, offset = 0x4, fixed_abs, tag = 'smem constant byte address 0x4 - core index']
  #allocation1 [shape = 'u32[72,128]{1,0:T(1,128)}', space=vmem, size = 0x9000, scoped, tag = 'internal scratch']
  %s0 = inlined_call_operand.vmem [shape: f32[32,512], index: 0, kind: input, shape index: {}]
  %s1 = inlined_call_operand.vmem [shape: f32[512,128], index: 1, kind: input, shape index: {}]
  %s2 = inlined_call_operand.vmem [shape: f32[1,128], index: 2, kind: output, shape index: {0}]
  %s3 = inlined_call_operand.vmem [shape: f32[1,128], index: 3, kind: output, shape index: {1}]
  %4 = xla_tuple %s2, %s3
  %s5 = sld [smem:[#allocation0]]
  $region30: #{downsample_stack_forward.6} parent=0
    _
  %s7 = ssub.s32 1, %s5
  %s8 = scalar_select 0, %s7, %s5
  // Predicated region
  $region2: #{downsample_stack_forward.6} parent=0 // pred_check
    _
  $region3: #{downsample_stack_forward.6} parent=0 // pred_check_branch
    %10 = sbr.rel (0) target = $region5
  $region4: #{downsample_stack_forward.6} parent=0 // pred_region
    _
  $region5: #{downsample_stack_forward.6} parent=0 // pred_fallthru
    _
  // Predicated region
  $region6: #{downsample_stack_forward.6} parent=0 // pred_check
    _
  $region7: #{downsample_stack_forward.6} parent=0 // pred_check_branch
    %12 = sbr.rel (0) target = $region9
  $region8: #{downsample_stack_forward.6} parent=0 // pred_region
    _
  $region9: #{downsample_stack_forward.6} parent=0 // pred_fallthru
    _
  %p13 = scmp.eq.s32.totalorder 0, 0
  // Predicated region
  $region10: #{downsample_stack_forward.6} parent=0 // pred_check
    %p14 = pneg %p13
  $region11: #{downsample_stack_forward.6} parent=0 // pred_check_branch
    %16 = sbr.rel (%p14) target = $region13
  $region12: #{downsample_stack_forward.6} parent=0 // pred_region
    %17 = vst [vmem:[%s2] sm:$0x1] 0.0
    %18 = vst [vmem:[%s3] sm:$0x1] 0.0
  $region13: #{downsample_stack_forward.6} parent=0 // pred_fallthru
    _
  %v19 = vld [vmem:[%s0] sm:$0xff]
  %v20 = vld [vmem:[%s0 + $0x8] sm:$0xff]
  %v21 = vld [vmem:[%s0 + $0x10] sm:$0xff]
  %v22 = vld [vmem:[%s0 + $0x18] sm:$0xff]
  %v23 = vld [vmem:[%s0 + $0x20] sm:$0xff]
  %v24 = vld [vmem:[%s0 + $0x28] sm:$0xff]
  %v25 = vld [vmem:[%s0 + $0x30] sm:$0xff]
  %v26 = vld [vmem:[%s0 + $0x38] sm:$0xff]
  %v27 = vld [vmem:[%s0 + $0x40] sm:$0xff]
  %v28 = vld [vmem:[%s0 + $0x48] sm:$0xff]
  %v29 = vld [vmem:[%s0 + $0x50] sm:$0xff]
  %v30 = vld [vmem:[%s0 + $0x58] sm:$0xff]
  %v31 = vld [vmem:[%s0 + $0x60] sm:$0xff]
  %v32 = vld [vmem:[%s0 + $0x68] sm:$0xff]
  %v33 = vld [vmem:[%s0 + $0x70] sm:$0xff]
  %v34 = vld [vmem:[%s0 + $0x78] sm:$0xff]
  %v35 = vld [vmem:[%s1] sm:$0xff]
  %v36 = vld [vmem:[%s1 + $0x8] sm:$0xff]
  %v37 = vld [vmem:[%s1 + $0x10] sm:$0xff]
  %v38 = vld [vmem:[%s1 + $0x18] sm:$0xff]
  %v39 = vld [vmem:[%s1 + $0x20] sm:$0xff]
  %v40 = vld [vmem:[%s1 + $0x28] sm:$0xff]
  %v41 = vld [vmem:[%s1 + $0x30] sm:$0xff]
  %v42 = vld [vmem:[%s1 + $0x38] sm:$0xff]
  %v43 = vld [vmem:[%s1 + $0x40] sm:$0xff]
  %v44 = vld [vmem:[%s1 + $0x48] sm:$0xff]
  %v45 = vld [vmem:[%s1 + $0x50] sm:$0xff]
  %v46 = vld [vmem:[%s1 + $0x58] sm:$0xff]
  %v47 = vld [vmem:[%s1 + $0x60] sm:$0xff]
  %v48 = vld [vmem:[%s1 + $0x68] sm:$0xff]
  %v49 = vld [vmem:[%s1 + $0x70] sm:$0xff]
  %v50 = vld [vmem:[%s1 + $0x78] sm:$0xff]
  %v51 = vld [vmem:[%s1 + $0x80] sm:$0xff]
  %v52 = vld [vmem:[%s1 + $0x88] sm:$0xff]
  %v53 = vld [vmem:[%s1 + $0x90] sm:$0xff]
  %v54 = vld [vmem:[%s1 + $0x98] sm:$0xff]
  %v55 = vld [vmem:[%s1 + $0xa0] sm:$0xff]
  %v56 = vld [vmem:[%s1 + $0xa8] sm:$0xff]
  %v57 = vld [vmem:[%s1 + $0xb0] sm:$0xff]
  %v58 = vld [vmem:[%s1 + $0xb8] sm:$0xff]
  %v59 = vld [vmem:[%s1 + $0xc0] sm:$0xff]
  %v60 = vld [vmem:[%s1 + $0xc8] sm:$0xff]
  %v61 = vld [vmem:[%s1 + $0xd0] sm:$0xff]
  %v62 = vld [vmem:[%s1 + $0xd8] sm:$0xff]
  %v63 = vld [vmem:[%s1 + $0xe0] sm:$0xff]
  %v64 = vld [vmem:[%s1 + $0xe8] sm:$0xff]
  %v65 = vld [vmem:[%s1 + $0xf0] sm:$0xff]
  %v66 = vld [vmem:[%s1 + $0xf8] sm:$0xff]
  %v67 = vld [vmem:[%s1 + $0x100] sm:$0xff]
  %v68 = vld [vmem:[%s1 + $0x108] sm:$0xff]
  %v69 = vld [vmem:[%s1 + $0x110] sm:$0xff]
  %v70 = vld [vmem:[%s1 + $0x118] sm:$0xff]
  %v71 = vld [vmem:[%s1 + $0x120] sm:$0xff]
  %v72 = vld [vmem:[%s1 + $0x128] sm:$0xff]
  %v73 = vld [vmem:[%s1 + $0x130] sm:$0xff]
  %v74 = vld [vmem:[%s1 + $0x138] sm:$0xff]
  %v75 = vld [vmem:[%s1 + $0x140] sm:$0xff]
  %v76 = vld [vmem:[%s1 + $0x148] sm:$0xff]
  %v77 = vld [vmem:[%s1 + $0x150] sm:$0xff]
  %v78 = vld [vmem:[%s1 + $0x158] sm:$0xff]
  %v79 = vld [vmem:[%s1 + $0x160] sm:$0xff]
  %v80 = vld [vmem:[%s1 + $0x168] sm:$0xff]
  %v81 = vld [vmem:[%s1 + $0x170] sm:$0xff]
  %v82 = vld [vmem:[%s1 + $0x178] sm:$0xff]
  %v83 = vld [vmem:[%s1 + $0x180] sm:$0xff]
  %v84 = vld [vmem:[%s1 + $0x188] sm:$0xff]
  %v85 = vld [vmem:[%s1 + $0x190] sm:$0xff]
  %v86 = vld [vmem:[%s1 + $0x198] sm:$0xff]
  %v87 = vld [vmem:[%s1 + $0x1a0] sm:$0xff]
  %v88 = vld [vmem:[%s1 + $0x1a8] sm:$0xff]
  %v89 = vld [vmem:[%s1 + $0x1b0] sm:$0xff]
  %v90 = vld [vmem:[%s1 + $0x1b8] sm:$0xff]
  %v91 = vld [vmem:[%s1 + $0x1c0] sm:$0xff]
  %v92 = vld [vmem:[%s1 + $0x1c8] sm:$0xff]
  %v93 = vld [vmem:[%s1 + $0x1d0] sm:$0xff]
  %v94 = vld [vmem:[%s1 + $0x1d8] sm:$0xff]
  %v95 = vld [vmem:[%s1 + $0x1e0] sm:$0xff]
  %v96 = vld [vmem:[%s1 + $0x1e8] sm:$0xff]
  %v97 = vld [vmem:[%s1 + $0x1f0] sm:$0xff]
  %v98 = vld [vmem:[%s1 + $0x1f8] sm:$0xff]
  %99 = vmatpush.msra.mxu0 %v50
  %100 = vmatpush.msra.mxu0 %v49
  %101 = vmatpush.msra.mxu0 %v48
  %102 = vmatpush.msra.mxu0 %v47
  %103 = vmatpush.msra.mxu0 %v46
  %104 = vmatpush.msra.mxu0 %v45
  %105 = vmatpush.msra.mxu0 %v44
  %106 = vmatpush.msra.mxu0 %v43
  %107 = vmatpush.msra.mxu0 %v42
  %108 = vmatpush.msra.mxu0 %v41
  %109 = vmatpush.msra.mxu0 %v40
  %110 = vmatpush.msra.mxu0 %v39
  %111 = vmatpush.msra.mxu0 %v38
  %112 = vmatpush.msra.mxu0 %v37
  %113 = vmatpush.msra.mxu0 %v36
  %114 = vmatpush.msra.mxu0 %v35
  %115 = vmatmul.f32.gmra.mxu0 %v19
  %v116 = vpop.f32.mrf.mxu0
  %v117 = vadd.f32 0.0, %v116
  %118 = vmatmul.f32.gmra.mxu0 %v23
  %v119 = vpop.f32.mrf.mxu0
  %v120 = vadd.f32 0.0, %v119
  %121 = vmatmul.f32.gmra.mxu0 %v27
  %v122 = vpop.f32.mrf.mxu0
  %v123 = vadd.f32 0.0, %v122
  %124 = vmatmul.f32.gmra.mxu0 %v31
  %v125 = vpop.f32.mrf.mxu0
  %v126 = vadd.f32 0.0, %v125
  %127 = vdwg.mxu0
  %128 = vmatpush.msra.mxu0 %v66
  %129 = vmatpush.msra.mxu0 %v65
  %130 = vmatpush.msra.mxu0 %v64
  %131 = vmatpush.msra.mxu0 %v63
  %132 = vmatpush.msra.mxu0 %v62
  %133 = vmatpush.msra.mxu0 %v61
  %134 = vmatpush.msra.mxu0 %v60
  %135 = vmatpush.msra.mxu0 %v59
  %136 = vmatpush.msra.mxu0 %v58
  %137 = vmatpush.msra.mxu0 %v57
  %138 = vmatpush.msra.mxu0 %v56
  %139 = vmatpush.msra.mxu0 %v55
  %140 = vmatpush.msra.mxu0 %v54
  %141 = vmatpush.msra.mxu0 %v53
  %142 = vmatpush.msra.mxu0 %v52
  %143 = vmatpush.msra.mxu0 %v51
  %144 = vmatmul.f32.gmra.mxu0 %v20
  %v145 = vpop.f32.mrf.mxu0
  %v146 = vadd.f32 %v117, %v145
  %147 = vmatmul.f32.gmra.mxu0 %v24
  %v148 = vpop.f32.mrf.mxu0
  %v149 = vadd.f32 %v120, %v148
  %150 = vmatmul.f32.gmra.mxu0 %v28
  %v151 = vpop.f32.mrf.mxu0
  %v152 = vadd.f32 %v123, %v151
  %153 = vmatmul.f32.gmra.mxu0 %v32
  %v154 = vpop.f32.mrf.mxu0
  %v155 = vadd.f32 %v126, %v154
  %156 = vdwg.mxu0
  %157 = vmatpush.msra.mxu0 %v82
  %158 = vmatpush.msra.mxu0 %v81
  %159 = vmatpush.msra.mxu0 %v80
  %160 = vmatpush.msra.mxu0 %v79
  %161 = vmatpush.msra.mxu0 %v78
  %162 = vmatpush.msra.mxu0 %v77
  %163 = vmatpush.msra.mxu0 %v76
  %164 = vmatpush.msra.mxu0 %v75
  %165 = vmatpush.msra.mxu0 %v74
  %166 = vmatpush.msra.mxu0 %v73
  %167 = vmatpush.msra.mxu0 %v72
  %168 = vmatpush.msra.mxu0 %v71
  %169 = vmatpush.msra.mxu0 %v70
  %170 = vmatpush.msra.mxu0 %v69
  %171 = vmatpush.msra.mxu0 %v68
  %172 = vmatpush.msra.mxu0 %v67
  %173 = vmatmul.f32.gmra.mxu0 %v21
  %v174 = vpop.f32.mrf.mxu0
  %v175 = vadd.f32 %v146, %v174
  %176 = vmatmul.f32.gmra.mxu0 %v25
  %v177 = vpop.f32.mrf.mxu0
  %v178 = vadd.f32 %v149, %v177
  %179 = vmatmul.f32.gmra.mxu0 %v29
  %v180 = vpop.f32.mrf.mxu0
  %v181 = vadd.f32 %v152, %v180
  %182 = vmatmul.f32.gmra.mxu0 %v33
  %v183 = vpop.f32.mrf.mxu0
  %v184 = vadd.f32 %v155, %v183
  %185 = vdwg.mxu0
  %186 = vmatpush.msra.mxu0 %v98
  %187 = vmatpush.msra.mxu0 %v97
  %188 = vmatpush.msra.mxu0 %v96
  %189 = vmatpush.msra.mxu0 %v95
  %190 = vmatpush.msra.mxu0 %v94
  %191 = vmatpush.msra.mxu0 %v93
  %192 = vmatpush.msra.mxu0 %v92
  %193 = vmatpush.msra.mxu0 %v91
  %194 = vmatpush.msra.mxu0 %v90
  %195 = vmatpush.msra.mxu0 %v89
  %196 = vmatpush.msra.mxu0 %v88
  %197 = vmatpush.msra.mxu0 %v87
  %198 = vmatpush.msra.mxu0 %v86
  %199 = vmatpush.msra.mxu0 %v85
  %200 = vmatpush.msra.mxu0 %v84
  %201 = vmatpush.msra.mxu0 %v83
  %202 = vmatmul.f32.gmra.mxu0 %v22
  %v203 = vpop.f32.mrf.mxu0
  %v204 = vadd.f32 %v175, %v203
  %205 = vmatmul.f32.gmra.mxu0 %v26
  %v206 = vpop.f32.mrf.mxu0
  %v207 = vadd.f32 %v178, %v206
  %208 = vmatmul.f32.gmra.mxu0 %v30
  %v209 = vpop.f32.mrf.mxu0
  %v210 = vadd.f32 %v181, %v209
  %211 = vmatmul.f32.gmra.mxu0 %v34
  %v212 = vpop.f32.mrf.mxu0
  %v213 = vadd.f32 %v184, %v212
  %214 = vdwg.mxu0
  %v215 = vld [vmem:[%s2] sm:$0x1]
  %v216 = vadd.f32 %v204, %v207
  %v217 = vadd.f32 %v216, %v210
  %v218 = vadd.f32 %v217, %v213
  %v219 = vrot.slane %v218, 4
  %v220 = vadd.f32 %v218, %v219
  %v221 = vrot.slane %v220, 2
  %v222 = vadd.f32 %v220, %v221
  %v223 = vrot.slane %v222, 1
  %v224 = vadd.f32 %v222, %v223
  %v225 = vadd.f32 %v215, %v224
  %226 = vst [vmem:[%s2] sm:$0x1] %v225
  %v227 = vld [vmem:[%s3] sm:$0x1]
  %v228 = vmul.f32 %v204, %v204
  %v229 = vmul.f32 %v207, %v207
  %v230 = vmul.f32 %v210, %v210
  %v231 = vmul.f32 %v213, %v213
  %v232 = vadd.f32 %v228, %v229
  %v233 = vadd.f32 %v232, %v230
  %v234 = vadd.f32 %v233, %v231
  %v235 = vrot.slane %v234, 4
  %v236 = vadd.f32 %v234, %v235
  %v237 = vrot.slane %v236, 2
  %v238 = vadd.f32 %v236, %v237
  %v239 = vrot.slane %v238, 1
  %v240 = vadd.f32 %v238, %v239
  %v241 = vadd.f32 %v227, %v240
  %242 = vst [vmem:[%s3] sm:$0x1] %v241
  // Predicated region
  $region14: #{downsample_stack_forward.6} parent=0 // pred_check
    _
  $region15: #{downsample_stack_forward.6} parent=0 // pred_check_branch
    %244 = sbr.rel (0) target = $region17
  $region16: #{downsample_stack_forward.6} parent=0 // pred_region
    _
  $region17: #{downsample_stack_forward.6} parent=0 // pred_fallthru
    _
  // Predicated region
  $region18: #{downsample_stack_forward.6} parent=0 // pred_check
    _
  $region19: #{downsample_stack_forward.6} parent=0 // pred_check_branch
    %246 = sbr.rel (0) target = $region21
  $region20: #{downsample_stack_forward.6} parent=0 // pred_region
    _
  $region21: #{downsample_stack_forward.6} parent=0 // pred_fallthru
    _
  // Predicated region
  $region22: #{downsample_stack_forward.6} parent=0 // pred_check
    _
  $region23: #{downsample_stack_forward.6} parent=0 // pred_check_branch
    %248 = sbr.rel (0) target = $region25
  $region24: #{downsample_stack_forward.6} parent=0 // pred_region
    _
  $region25: #{downsample_stack_forward.6} parent=0 // pred_fallthru
    _
  // Predicated region
  $region26: #{downsample_stack_forward.6} parent=0 // pred_check
    _
  $region27: #{downsample_stack_forward.6} parent=0 // pred_check_branch
    %250 = sbr.rel (0) target = $region29
  $region28: #{downsample_stack_forward.6} parent=0 // pred_region
    _
  $region29: #{downsample_stack_forward.6} parent=0 // pred_fallthru
    _

// kernel: downsample_stack_forward.7
$region0: #{downsample_stack_forward.7}
  #allocation0 [shape = 'u32[]', space=smem, size = 0x4, offset = 0x4, fixed_abs, tag = 'smem constant byte address 0x4 - core index']
  #allocation1 [shape = 'u32[72,128]{1,0:T(1,128)}', space=vmem, size = 0x9000, scoped, tag = 'internal scratch']
  %s0 = inlined_call_operand.vmem [shape: f32[32,512], index: 0, kind: input, shape index: {}]
  %s1 = inlined_call_operand.vmem [shape: f32[512,128], index: 1, kind: input, shape index: {}]
  %s2 = inlined_call_operand.vmem [shape: f32[1,128], index: 2, kind: input, shape index: {}]
  %s3 = inlined_call_operand.vmem [shape: f32[1,128], index: 3, kind: input, shape index: {}]
  %s4 = inlined_call_operand.vmem [shape: f32[32,128], index: 4, kind: output, shape index: {}]
  %s5 = sld [smem:[#allocation0]]
  $region26: #{downsample_stack_forward.7} parent=0
    _
  %s7 = ssub.s32 1, %s5
  %s8 = scalar_select 0, %s7, %s5
  // Predicated region
  $region2: #{downsample_stack_forward.7} parent=0 // pred_check
    _
  $region3: #{downsample_stack_forward.7} parent=0 // pred_check_branch
    %10 = sbr.rel (0) target = $region5
  $region4: #{downsample_stack_forward.7} parent=0 // pred_region
    _
  $region5: #{downsample_stack_forward.7} parent=0 // pred_fallthru
    _
  // Predicated region
  $region6: #{downsample_stack_forward.7} parent=0 // pred_check
    _
  $region7: #{downsample_stack_forward.7} parent=0 // pred_check_branch
    %12 = sbr.rel (0) target = $region9
  $region8: #{downsample_stack_forward.7} parent=0 // pred_region
    _
  $region9: #{downsample_stack_forward.7} parent=0 // pred_fallthru
    _
  // Predicated region
  $region10: #{downsample_stack_forward.7} parent=0 // pred_check
    _
  $region11: #{downsample_stack_forward.7} parent=0 // pred_check_branch
    %14 = sbr.rel (0) target = $region13
  $region12: #{downsample_stack_forward.7} parent=0 // pred_region
    _
  $region13: #{downsample_stack_forward.7} parent=0 // pred_fallthru
    _
  // Predicated region
  $region14: #{downsample_stack_forward.7} parent=0 // pred_check
    _
  $region15: #{downsample_stack_forward.7} parent=0 // pred_check_branch
    %16 = sbr.rel (0) target = $region17
  $region16: #{downsample_stack_forward.7} parent=0 // pred_region
    _
  $region17: #{downsample_stack_forward.7} parent=0 // pred_fallthru
    _
  %v17 = vld [vmem:[%s0] sm:$0xff]
  %v18 = vld [vmem:[%s0 + $0x8] sm:$0xff]
  %v19 = vld [vmem:[%s0 + $0x10] sm:$0xff]
  %v20 = vld [vmem:[%s0 + $0x18] sm:$0xff]
  %v21 = vld [vmem:[%s0 + $0x20] sm:$0xff]
  %v22 = vld [vmem:[%s0 + $0x28] sm:$0xff]
  %v23 = vld [vmem:[%s0 + $0x30] sm:$0xff]
  %v24 = vld [vmem:[%s0 + $0x38] sm:$0xff]
  %v25 = vld [vmem:[%s0 + $0x40] sm:$0xff]
  %v26 = vld [vmem:[%s0 + $0x48] sm:$0xff]
  %v27 = vld [vmem:[%s0 + $0x50] sm:$0xff]
  %v28 = vld [vmem:[%s0 + $0x58] sm:$0xff]
  %v29 = vld [vmem:[%s0 + $0x60] sm:$0xff]
  %v30 = vld [vmem:[%s0 + $0x68] sm:$0xff]
  %v31 = vld [vmem:[%s0 + $0x70] sm:$0xff]
  %v32 = vld [vmem:[%s0 + $0x78] sm:$0xff]
  %v33 = vld [vmem:[%s1] sm:$0xff]
  %v34 = vld [vmem:[%s1 + $0x8] sm:$0xff]
  %v35 = vld [vmem:[%s1 + $0x10] sm:$0xff]
  %v36 = vld [vmem:[%s1 + $0x18] sm:$0xff]
  %v37 = vld [vmem:[%s1 + $0x20] sm:$0xff]
  %v38 = vld [vmem:[%s1 + $0x28] sm:$0xff]
  %v39 = vld [vmem:[%s1 + $0x30] sm:$0xff]
  %v40 = vld [vmem:[%s1 + $0x38] sm:$0xff]
  %v41 = vld [vmem:[%s1 + $0x40] sm:$0xff]
  %v42 = vld [vmem:[%s1 + $0x48] sm:$0xff]
  %v43 = vld [vmem:[%s1 + $0x50] sm:$0xff]
  %v44 = vld [vmem:[%s1 + $0x58] sm:$0xff]
  %v45 = vld [vmem:[%s1 + $0x60] sm:$0xff]
  %v46 = vld [vmem:[%s1 + $0x68] sm:$0xff]
  %v47 = vld [vmem:[%s1 + $0x70] sm:$0xff]
  %v48 = vld [vmem:[%s1 + $0x78] sm:$0xff]
  %v49 = vld [vmem:[%s1 + $0x80] sm:$0xff]
  %v50 = vld [vmem:[%s1 + $0x88] sm:$0xff]
  %v51 = vld [vmem:[%s1 + $0x90] sm:$0xff]
  %v52 = vld [vmem:[%s1 + $0x98] sm:$0xff]
  %v53 = vld [vmem:[%s1 + $0xa0] sm:$0xff]
  %v54 = vld [vmem:[%s1 + $0xa8] sm:$0xff]
  %v55 = vld [vmem:[%s1 + $0xb0] sm:$0xff]
  %v56 = vld [vmem:[%s1 + $0xb8] sm:$0xff]
  %v57 = vld [vmem:[%s1 + $0xc0] sm:$0xff]
  %v58 = vld [vmem:[%s1 + $0xc8] sm:$0xff]
  %v59 = vld [vmem:[%s1 + $0xd0] sm:$0xff]
  %v60 = vld [vmem:[%s1 + $0xd8] sm:$0xff]
  %v61 = vld [vmem:[%s1 + $0xe0] sm:$0xff]
  %v62 = vld [vmem:[%s1 + $0xe8] sm:$0xff]
  %v63 = vld [vmem:[%s1 + $0xf0] sm:$0xff]
  %v64 = vld [vmem:[%s1 + $0xf8] sm:$0xff]
  %v65 = vld [vmem:[%s1 + $0x100] sm:$0xff]
  %v66 = vld [vmem:[%s1 + $0x108] sm:$0xff]
  %v67 = vld [vmem:[%s1 + $0x110] sm:$0xff]
  %v68 = vld [vmem:[%s1 + $0x118] sm:$0xff]
  %v69 = vld [vmem:[%s1 + $0x120] sm:$0xff]
  %v70 = vld [vmem:[%s1 + $0x128] sm:$0xff]
  %v71 = vld [vmem:[%s1 + $0x130] sm:$0xff]
  %v72 = vld [vmem:[%s1 + $0x138] sm:$0xff]
  %v73 = vld [vmem:[%s1 + $0x140] sm:$0xff]
  %v74 = vld [vmem:[%s1 + $0x148] sm:$0xff]
  %v75 = vld [vmem:[%s1 + $0x150] sm:$0xff]
  %v76 = vld [vmem:[%s1 + $0x158] sm:$0xff]
  %v77 = vld [vmem:[%s1 + $0x160] sm:$0xff]
  %v78 = vld [vmem:[%s1 + $0x168] sm:$0xff]
  %v79 = vld [vmem:[%s1 + $0x170] sm:$0xff]
  %v80 = vld [vmem:[%s1 + $0x178] sm:$0xff]
  %v81 = vld [vmem:[%s1 + $0x180] sm:$0xff]
  %v82 = vld [vmem:[%s1 + $0x188] sm:$0xff]
  %v83 = vld [vmem:[%s1 + $0x190] sm:$0xff]
  %v84 = vld [vmem:[%s1 + $0x198] sm:$0xff]
  %v85 = vld [vmem:[%s1 + $0x1a0] sm:$0xff]
  %v86 = vld [vmem:[%s1 + $0x1a8] sm:$0xff]
  %v87 = vld [vmem:[%s1 + $0x1b0] sm:$0xff]
  %v88 = vld [vmem:[%s1 + $0x1b8] sm:$0xff]
  %v89 = vld [vmem:[%s1 + $0x1c0] sm:$0xff]
  %v90 = vld [vmem:[%s1 + $0x1c8] sm:$0xff]
  %v91 = vld [vmem:[%s1 + $0x1d0] sm:$0xff]
  %v92 = vld [vmem:[%s1 + $0x1d8] sm:$0xff]
  %v93 = vld [vmem:[%s1 + $0x1e0] sm:$0xff]
  %v94 = vld [vmem:[%s1 + $0x1e8] sm:$0xff]
  %v95 = vld [vmem:[%s1 + $0x1f0] sm:$0xff]
  %v96 = vld [vmem:[%s1 + $0x1f8] sm:$0xff]
  %97 = vmatpush.msra.mxu0 %v48
  %98 = vmatpush.msra.mxu0 %v47
  %99 = vmatpush.msra.mxu0 %v46
  %100 = vmatpush.msra.mxu0 %v45
  %101 = vmatpush.msra.mxu0 %v44
  %102 = vmatpush.msra.mxu0 %v43
  %103 = vmatpush.msra.mxu0 %v42
  %104 = vmatpush.msra.mxu0 %v41
  %105 = vmatpush.msra.mxu0 %v40
  %106 = vmatpush.msra.mxu0 %v39
  %107 = vmatpush.msra.mxu0 %v38
  %108 = vmatpush.msra.mxu0 %v37
  %109 = vmatpush.msra.mxu0 %v36
  %110 = vmatpush.msra.mxu0 %v35
  %111 = vmatpush.msra.mxu0 %v34
  %112 = vmatpush.msra.mxu0 %v33
  %113 = vmatmul.f32.gmra.mxu0 %v17
  %v114 = vpop.f32.mrf.mxu0
  %v115 = vadd.f32 0.0, %v114
  %116 = vmatmul.f32.gmra.mxu0 %v21
  %v117 = vpop.f32.mrf.mxu0
  %v118 = vadd.f32 0.0, %v117
  %119 = vmatmul.f32.gmra.mxu0 %v25
  %v120 = vpop.f32.mrf.mxu0
  %v121 = vadd.f32 0.0, %v120
  %122 = vmatmul.f32.gmra.mxu0 %v29
  %v123 = vpop.f32.mrf.mxu0
  %v124 = vadd.f32 0.0, %v123
  %125 = vdwg.mxu0
  %126 = vmatpush.msra.mxu0 %v64
  %127 = vmatpush.msra.mxu0 %v63
  %128 = vmatpush.msra.mxu0 %v62
  %129 = vmatpush.msra.mxu0 %v61
  %130 = vmatpush.msra.mxu0 %v60
  %131 = vmatpush.msra.mxu0 %v59
  %132 = vmatpush.msra.mxu0 %v58
  %133 = vmatpush.msra.mxu0 %v57
  %134 = vmatpush.msra.mxu0 %v56
  %135 = vmatpush.msra.mxu0 %v55
  %136 = vmatpush.msra.mxu0 %v54
  %137 = vmatpush.msra.mxu0 %v53
  %138 = vmatpush.msra.mxu0 %v52
  %139 = vmatpush.msra.mxu0 %v51
  %140 = vmatpush.msra.mxu0 %v50
  %141 = vmatpush.msra.mxu0 %v49
  %142 = vmatmul.f32.gmra.mxu0 %v18
  %v143 = vpop.f32.mrf.mxu0
  %v144 = vadd.f32 %v115, %v143
  %145 = vmatmul.f32.gmra.mxu0 %v22
  %v146 = vpop.f32.mrf.mxu0
  %v147 = vadd.f32 %v118, %v146
  %148 = vmatmul.f32.gmra.mxu0 %v26
  %v149 = vpop.f32.mrf.mxu0
  %v150 = vadd.f32 %v121, %v149
  %151 = vmatmul.f32.gmra.mxu0 %v30
  %v152 = vpop.f32.mrf.mxu0
  %v153 = vadd.f32 %v124, %v152
  %154 = vdwg.mxu0
  %155 = vmatpush.msra.mxu0 %v80
  %156 = vmatpush.msra.mxu0 %v79
  %157 = vmatpush.msra.mxu0 %v78
  %158 = vmatpush.msra.mxu0 %v77
  %159 = vmatpush.msra.mxu0 %v76
  %160 = vmatpush.msra.mxu0 %v75
  %161 = vmatpush.msra.mxu0 %v74
  %162 = vmatpush.msra.mxu0 %v73
  %163 = vmatpush.msra.mxu0 %v72
  %164 = vmatpush.msra.mxu0 %v71
  %165 = vmatpush.msra.mxu0 %v70
  %166 = vmatpush.msra.mxu0 %v69
  %167 = vmatpush.msra.mxu0 %v68
  %168 = vmatpush.msra.mxu0 %v67
  %169 = vmatpush.msra.mxu0 %v66
  %170 = vmatpush.msra.mxu0 %v65
  %171 = vmatmul.f32.gmra.mxu0 %v19
  %v172 = vpop.f32.mrf.mxu0
  %v173 = vadd.f32 %v144, %v172
  %174 = vmatmul.f32.gmra.mxu0 %v23
  %v175 = vpop.f32.mrf.mxu0
  %v176 = vadd.f32 %v147, %v175
  %177 = vmatmul.f32.gmra.mxu0 %v27
  %v178 = vpop.f32.mrf.mxu0
  %v179 = vadd.f32 %v150, %v178
  %180 = vmatmul.f32.gmra.mxu0 %v31
  %v181 = vpop.f32.mrf.mxu0
  %v182 = vadd.f32 %v153, %v181
  %183 = vdwg.mxu0
  %184 = vmatpush.msra.mxu0 %v96
  %185 = vmatpush.msra.mxu0 %v95
  %186 = vmatpush.msra.mxu0 %v94
  %187 = vmatpush.msra.mxu0 %v93
  %188 = vmatpush.msra.mxu0 %v92
  %189 = vmatpush.msra.mxu0 %v91
  %190 = vmatpush.msra.mxu0 %v90
  %191 = vmatpush.msra.mxu0 %v89
  %192 = vmatpush.msra.mxu0 %v88
  %193 = vmatpush.msra.mxu0 %v87
  %194 = vmatpush.msra.mxu0 %v86
  %195 = vmatpush.msra.mxu0 %v85
  %196 = vmatpush.msra.mxu0 %v84
  %197 = vmatpush.msra.mxu0 %v83
  %198 = vmatpush.msra.mxu0 %v82
  %199 = vmatpush.msra.mxu0 %v81
  %200 = vmatmul.f32.gmra.mxu0 %v20
  %v201 = vpop.f32.mrf.mxu0
  %v202 = vadd.f32 %v173, %v201
  %203 = vmatmul.f32.gmra.mxu0 %v24
  %v204 = vpop.f32.mrf.mxu0
  %v205 = vadd.f32 %v176, %v204
  %206 = vmatmul.f32.gmra.mxu0 %v28
  %v207 = vpop.f32.mrf.mxu0
  %v208 = vadd.f32 %v179, %v207
  %209 = vmatmul.f32.gmra.mxu0 %v32
  %v210 = vpop.f32.mrf.mxu0
  %v211 = vadd.f32 %v182, %v210
  %212 = vdwg.mxu0
  %v213 = vld [vmem:[%s2] sm:$0x1]
  %v215 = vperm.slane %v213, 0
  %v217 = vmul.f32 %v202, %v215
  %v218 = vmul.f32 %v205, %v215
  %v219 = vmul.f32 %v208, %v215
  %v220 = vmul.f32 %v211, %v215
  %v221 = vld [vmem:[%s3] sm:$0x1]
  %v223 = vperm.slane %v221, 0
  %v225 = vadd.f32 %v217, %v223
  %v226 = vadd.f32 %v218, %v223
  %v227 = vadd.f32 %v219, %v223
  %v228 = vadd.f32 %v220, %v223
  %v229 = vmul.f32 %v225, 0.5
  %v230 = vmul.f32 %v226, 0.5
  %v231 = vmul.f32 %v227, 0.5
  %v232 = vmul.f32 %v228, 0.5
  %v233 = vmul.f32 %v225, 0.70710677
  %v234 = vmul.f32 %v226, 0.70710677
  %v235 = vmul.f32 %v227, 0.70710677
  %v236 = vmul.f32 %v228, 0.70710677
  %v237 = vmul.f32 %v233, %v233
  %v238 = vmin.f32 16.0, %v237
  %v239 = vmul.f32 %v238, 2.1237322e-06
  %v240 = vadd.f32 %v239, 0.00028619796
  %v241 = vmul.f32 %v238, %v240
  %v242 = vadd.f32 %v241, 0.0036580483
  %v243 = vmul.f32 %v238, %v242
  %v244 = vadd.f32 %v243, 0.05243302
  %v245 = vmul.f32 %v238, %v244
  %v246 = vadd.f32 %v245, 0.18741608
  %v247 = vmul.f32 %v238, %v246
  %v248 = vadd.f32 %v247, 1.1283791
  %v249 = vmul.f32 %v233, %v248
  %v250 = vmul.f32 %v238, 3.8918573e-05
  %v251 = vadd.f32 %v250, 0.001143296
  %v252 = vmul.f32 %v238, %v251
  %v253 = vadd.f32 %v252, 0.014752088
  %v254 = vmul.f32 %v238, %v253
  %v255 = vadd.f32 %v254, 0.112945676
  %v256 = vmul.f32 %v238, %v255
  %v257 = vadd.f32 %v256, 0.4994258
  %v258 = vmul.f32 %v238, %v257
  %v259 = vadd.f32 %v258, 1.0
  %v260 = vrcp.pop %v259
  %v261 = vmul.f32 %v259, %v260
  %v262 = vsub.f32 1.0, %v261
  %v263 = vmul.f32 %v260, %v262
  %v264 = vadd.f32 %v260, %v263
  %vm265 = vweird.f32 %v259
  %vm266 = vweird.f32 %v260
  %vm267 = vmor %vm265, %vm266
  %v268 = vsel %vm267, %v260, %v264
  %v269 = vand.u32 2147483647, %v259
  %vm270 = vcmp.eq.f32.partialorder %v269, 8.507059e+37
  %v271 = vand.u32 %v259, 2147483648
  %v272 = vor.u32 1.1754944e-38, %v271
  %v273 = vsel %vm270, %v272, %v268
  %v274 = vmul.f32 %v249, %v273
  %v275 = vmin.f32 %v274, 1.0
  %v276 = vmax.f32 %v275, -1.0
  %v277 = vmul.f32 %v234, %v234
  %v278 = vmin.f32 16.0, %v277
  %v279 = vmul.f32 %v278, 2.1237322e-06
  %v280 = vadd.f32 %v279, 0.00028619796
  %v281 = vmul.f32 %v278, %v280
  %v282 = vadd.f32 %v281, 0.0036580483
  %v283 = vmul.f32 %v278, %v282
  %v284 = vadd.f32 %v283, 0.05243302
  %v285 = vmul.f32 %v278, %v284
  %v286 = vadd.f32 %v285, 0.18741608
  %v287 = vmul.f32 %v278, %v286
  %v288 = vadd.f32 %v287, 1.1283791
  %v289 = vmul.f32 %v234, %v288
  %v290 = vmul.f32 %v278, 3.8918573e-05
  %v291 = vadd.f32 %v290, 0.001143296
  %v292 = vmul.f32 %v278, %v291
  %v293 = vadd.f32 %v292, 0.014752088
  %v294 = vmul.f32 %v278, %v293
  %v295 = vadd.f32 %v294, 0.112945676
  %v296 = vmul.f32 %v278, %v295
  %v297 = vadd.f32 %v296, 0.4994258
  %v298 = vmul.f32 %v278, %v297
  %v299 = vadd.f32 %v298, 1.0
  %v300 = vrcp.pop %v299
  %v301 = vmul.f32 %v299, %v300
  %v302 = vsub.f32 1.0, %v301
  %v303 = vmul.f32 %v300, %v302
  %v304 = vadd.f32 %v300, %v303
  %vm305 = vweird.f32 %v299
  %vm306 = vweird.f32 %v300
  %vm307 = vmor %vm305, %vm306
  %v308 = vsel %vm307, %v300, %v304
  %v309 = vand.u32 2147483647, %v299
  %vm310 = vcmp.eq.f32.partialorder %v309, 8.507059e+37
  %v311 = vand.u32 %v299, 2147483648
  %v312 = vor.u32 1.1754944e-38, %v311
  %v313 = vsel %vm310, %v312, %v308
  %v314 = vmul.f32 %v289, %v313
  %v315 = vmin.f32 %v314, 1.0
  %v316 = vmax.f32 %v315, -1.0
  %v317 = vmul.f32 %v235, %v235
  %v318 = vmin.f32 16.0, %v317
  %v319 = vmul.f32 %v318, 2.1237322e-06
  %v320 = vadd.f32 %v319, 0.00028619796
  %v321 = vmul.f32 %v318, %v320
  %v322 = vadd.f32 %v321, 0.0036580483
  %v323 = vmul.f32 %v318, %v322
  %v324 = vadd.f32 %v323, 0.05243302
  %v325 = vmul.f32 %v318, %v324
  %v326 = vadd.f32 %v325, 0.18741608
  %v327 = vmul.f32 %v318, %v326
  %v328 = vadd.f32 %v327, 1.1283791
  %v329 = vmul.f32 %v235, %v328
  %v330 = vmul.f32 %v318, 3.8918573e-05
  %v331 = vadd.f32 %v330, 0.001143296
  %v332 = vmul.f32 %v318, %v331
  %v333 = vadd.f32 %v332, 0.014752088
  %v334 = vmul.f32 %v318, %v333
  %v335 = vadd.f32 %v334, 0.112945676
  %v336 = vmul.f32 %v318, %v335
  %v337 = vadd.f32 %v336, 0.4994258
  %v338 = vmul.f32 %v318, %v337
  %v339 = vadd.f32 %v338, 1.0
  %v340 = vrcp.pop %v339
  %v341 = vmul.f32 %v339, %v340
  %v342 = vsub.f32 1.0, %v341
  %v343 = vmul.f32 %v340, %v342
  %v344 = vadd.f32 %v340, %v343
  %vm345 = vweird.f32 %v339
  %vm346 = vweird.f32 %v340
  %vm347 = vmor %vm345, %vm346
  %v348 = vsel %vm347, %v340, %v344
  %v349 = vand.u32 2147483647, %v339
  %vm350 = vcmp.eq.f32.partialorder %v349, 8.507059e+37
  %v351 = vand.u32 %v339, 2147483648
  %v352 = vor.u32 1.1754944e-38, %v351
  %v353 = vsel %vm350, %v352, %v348
  %v354 = vmul.f32 %v329, %v353
  %v355 = vmin.f32 %v354, 1.0
  %v356 = vmax.f32 %v355, -1.0
  %v357 = vmul.f32 %v236, %v236
  %v358 = vmin.f32 16.0, %v357
  %v359 = vmul.f32 %v358, 2.1237322e-06
  %v360 = vadd.f32 %v359, 0.00028619796
  %v361 = vmul.f32 %v358, %v360
  %v362 = vadd.f32 %v361, 0.0036580483
  %v363 = vmul.f32 %v358, %v362
  %v364 = vadd.f32 %v363, 0.05243302
  %v365 = vmul.f32 %v358, %v364
  %v366 = vadd.f32 %v365, 0.18741608
  %v367 = vmul.f32 %v358, %v366
  %v368 = vadd.f32 %v367, 1.1283791
  %v369 = vmul.f32 %v236, %v368
  %v370 = vmul.f32 %v358, 3.8918573e-05
  %v371 = vadd.f32 %v370, 0.001143296
  %v372 = vmul.f32 %v358, %v371
  %v373 = vadd.f32 %v372, 0.014752088
  %v374 = vmul.f32 %v358, %v373
  %v375 = vadd.f32 %v374, 0.112945676
  %v376 = vmul.f32 %v358, %v375
  %v377 = vadd.f32 %v376, 0.4994258
  %v378 = vmul.f32 %v358, %v377
  %v379 = vadd.f32 %v378, 1.0
  %v380 = vrcp.pop %v379
  %v381 = vmul.f32 %v379, %v380
  %v382 = vsub.f32 1.0, %v381
  %v383 = vmul.f32 %v380, %v382
  %v384 = vadd.f32 %v380, %v383
  %vm385 = vweird.f32 %v379
  %vm386 = vweird.f32 %v380
  %vm387 = vmor %vm385, %vm386
  %v388 = vsel %vm387, %v380, %v384
  %v389 = vand.u32 2147483647, %v379
  %vm390 = vcmp.eq.f32.partialorder %v389, 8.507059e+37
  %v391 = vand.u32 %v379, 2147483648
  %v392 = vor.u32 1.1754944e-38, %v391
  %v393 = vsel %vm390, %v392, %v388
  %v394 = vmul.f32 %v369, %v393
  %v395 = vmin.f32 %v394, 1.0
  %v396 = vmax.f32 %v395, -1.0
  %v397 = vadd.f32 %v276, 1.0
  %v398 = vadd.f32 %v316, 1.0
  %v399 = vadd.f32 %v356, 1.0
  %v400 = vadd.f32 %v396, 1.0
  %v401 = vmul.f32 %v229, %v397
  %v402 = vmul.f32 %v230, %v398
  %v403 = vmul.f32 %v231, %v399
  %v404 = vmul.f32 %v232, %v400
  %405 = vst [vmem:[%s4] sm:$0xff] %v401
  %406 = vst [vmem:[%s4 + $0x8] sm:$0xff] %v402
  %407 = vst [vmem:[%s4 + $0x10] sm:$0xff] %v403
  %408 = vst [vmem:[%s4 + $0x18] sm:$0xff] %v404
  // Predicated region
  $region18: #{downsample_stack_forward.7} parent=0 // pred_check
    _
  $region19: #{downsample_stack_forward.7} parent=0 // pred_check_branch
    %410 = sbr.rel (0) target = $region21
  $region20: #{downsample_stack_forward.7} parent=0 // pred_region
    _
  $region21: #{downsample_stack_forward.7} parent=0 // pred_fallthru
    _
  // Predicated region
  $region22: #{downsample_stack_forward.7} parent=0 // pred_check
    _
  $region23: #{downsample_stack_forward.7} parent=0 // pred_check_branch
    %412 = sbr.rel (0) target = $region25
  $region24: #{downsample_stack_forward.7} parent=0 // pred_region
    _
  $region25: #{downsample_stack_forward.7} parent=0 // pred_fallthru
    _

</llo_original>
